<compile_context>
chip_gen: v5e
topology: v5e:2x2
jax: 0.10.0
libtpu: 0.0.40
codegen_flags: <defaults>
</compile_context>

<pallas_src>
import functools

import jax
import jax.numpy as jnp
from jax.experimental import pallas as pl
from jax.experimental.pallas import tpu as pltpu

# ----------------------------- model dims (small, synthetic) -----------------
B = 2          # batch
S = 8          # sequence length (maximum_token_len)
H = 32         # hidden size
NH = 2         # attention heads
HD = H // NH   # head dim
F = 64         # FFN intermediate size
NLAYERS = 2
VOCAB = 50
LN_EPS = 1e-12
CLS_ID, SEP_ID, PAD_ID = 1, 2, 0
BS = B * S


# ----------------------------- shared math helper -----------------------------
def _layer_norm(v, g, b):
    mu = jnp.mean(v, axis=-1, keepdims=True)
    var = jnp.mean((v - mu) ** 2, axis=-1, keepdims=True)
    return (v - mu) * jax.lax.rsqrt(var + LN_EPS) * g + b


# ----------------------------- fused Pallas kernel ----------------------------
def fused_encoder_kernel(x_ref, negb_ref, pmat_ref,
                         wqkv_ref, wo_ref, w1_ref, w2_ref,
                         bqkv_ref, bb1_ref, vech_ref,
                         o_ref,
                         h_scr, ctx_scr):
    """Grid axis = layer index.  Hidden state lives in VMEM scratch h_scr.

    vech_ref rows: 0=bo, 1=g1, 2=be1, 3=bb2, 4=g2, 5=be2 (each (1, H)).
    """
    layer = pl.program_id(0)

    # Load embeddings into the resident hidden-state scratch at layer 0.
    @pl.when(layer == 0)
    def _():
        h_scr[...] = x_ref[...]

    x = h_scr[...]                       # (B*S, H) f32
    vech = vech_ref[0]                   # (6, H)

    # --- fused QKV projection on the flattened slab ---
    qkv = jnp.dot(x, wqkv_ref[0], preferred_element_type=jnp.float32) + bqkv_ref[0]

    scale = HD ** -0.5
    # --- multi-head self attention: tiny SxS matmuls, static (b, head) loop ---
    for b in range(B):
        r0, r1 = b * S, (b + 1) * S
        negb = negb_ref[b:b + 1, :]      # (1, S) additive key mask (0 or -1e9)
        for h in range(NH):
            q_h = qkv[r0:r1, h * HD:(h + 1) * HD]
            k_h = qkv[r0:r1, H + h * HD:H + (h + 1) * HD]
            v_h = qkv[r0:r1, 2 * H + h * HD:2 * H + (h + 1) * HD]
            # q @ k^T without an explicit transpose (contract last dims).
            s = jax.lax.dot_general(q_h, k_h, (((1,), (1,)), ((), ())),
                                    preferred_element_type=jnp.float32)
            s = s * scale + negb
            s = s - jnp.max(s, axis=-1, keepdims=True)
            p = jnp.exp(s)
            p = p * pl.reciprocal(jnp.sum(p, axis=-1, keepdims=True), approx=True)
            # write head context directly at its static lane offset (no concat)
            ctx_scr[r0:r1, h * HD:(h + 1) * HD] = jnp.dot(
                p, v_h, preferred_element_type=jnp.float32)

    attn = jnp.dot(ctx_scr[...], wo_ref[0],
                   preferred_element_type=jnp.float32) + vech[0:1]
    h1 = _layer_norm(x + attn, vech[1:2], vech[2:3])

    # --- feed forward ---
    ff = jnp.dot(h1, w1_ref[0], preferred_element_type=jnp.float32) + bb1_ref[0]
    ff = jax.nn.gelu(ff, approximate=True)
    ff = jnp.dot(ff, w2_ref[0], preferred_element_type=jnp.float32) + vech[3:4]
    hnew = _layer_norm(h1 + ff, vech[4:5], vech[5:6])
    h_scr[...] = hnew

    # --- pool_and_normalize fused into the last layer step ---
    @pl.when(layer == pl.num_programs(0) - 1)
    def _():
        # pmat[b, b*S + s] = mask[b, s] / count[b]  -> masked mean pool via MXU
        pooled = jnp.dot(pmat_ref[...], hnew, preferred_element_type=jnp.float32)
        sq = jnp.sum(pooled * pooled, axis=-1, keepdims=True)
        # clamp squared norm at 1e-18 == torch.clamp(norm, min=1e-9)
        o_ref[...] = pooled * jax.lax.rsqrt(jnp.maximum(sq, 1e-18))


def run_fused_encoder(x_flat, neg_bias, pool_mat, packed):
    return pl.pallas_call(
        fused_encoder_kernel,
        out_shape=jax.ShapeDtypeStruct((B, H), jnp.float32),
        grid_spec=pltpu.PrefetchScalarGridSpec(
            num_scalar_prefetch=0,
            grid=(NLAYERS,),
            in_specs=[
                pl.BlockSpec((BS, H), lambda l: (0, 0)),          # embeddings
                pl.BlockSpec((B, S), lambda l: (0, 0)),           # additive mask bias
                pl.BlockSpec((B, BS), lambda l: (0, 0)),          # pooling matrix
                pl.BlockSpec((1, H, 3 * H), lambda l: (l, 0, 0)),  # wqkv
                pl.BlockSpec((1, H, H), lambda l: (l, 0, 0)),      # wo
                pl.BlockSpec((1, H, F), lambda l: (l, 0, 0)),      # w1
                pl.BlockSpec((1, F, H), lambda l: (l, 0, 0)),      # w2
                pl.BlockSpec((1, 1, 3 * H), lambda l: (l, 0, 0)),  # bqkv
                pl.BlockSpec((1, 1, F), lambda l: (l, 0, 0)),      # bb1
                pl.BlockSpec((1, 6, H), lambda l: (l, 0, 0)),      # packed vectors
            ],
            out_specs=pl.BlockSpec((B, H), lambda l: (0, 0)),
            scratch_shapes=[
                pltpu.VMEM((BS, H), jnp.float32),   # resident hidden state
                pltpu.VMEM((BS, H), jnp.float32),   # attention context slab
            ]),
        compiler_params=pltpu.CompilerParams(
            dimension_semantics=("arbitrary",)),    # layers are sequential
    )(x_flat, neg_bias, pool_mat,
      packed["wqkv"], packed["wo"], packed["w1"], packed["w2"],
      packed["bqkv"], packed["bb1"], packed["vech"])


# ----------------------------- wrappers ---------------------------------------
def pack_layer_params(layers):
    """Stack per-layer weights over a leading layer axis, fuse QKV, pack vectors."""
    return {
        "wqkv": jnp.stack([jnp.concatenate([p["wq"], p["wk"], p["wv"]], axis=1)
                           for p in layers]),                        # (L, H, 3H)
        "bqkv": jnp.stack([jnp.concatenate([p["bq"], p["bk"], p["bv"]], axis=1)
                           for p in layers]),                        # (L, 1, 3H)
        "wo": jnp.stack([p["wo"] for p in layers]),                   # (L, H, H)
        "w1": jnp.stack([p["w1"] for p in layers]),                   # (L, H, F)
        "w2": jnp.stack([p["w2"] for p in layers]),                   # (L, F, H)
        "bb1": jnp.stack([p["bb1"] for p in layers]),                 # (L, 1, F)
        "vech": jnp.stack([jnp.concatenate(
            [p["bo"], p["g1"], p["be1"], p["bb2"], p["g2"], p["be2"]], axis=0)
            for p in layers]),                                        # (L, 6, H)
    }


def star_encoder_forward(input_ids, attention_mask, params):
    """Full forward: embeddings (glue, plain JAX) -> single fused Pallas call."""
    # TODO(synk): tokenizer (string -> ids) and pretrained HF checkpoint loading
    # have no Pallas equivalent; token ids / random weights are inputs here.
    mask_f = attention_mask.astype(jnp.float32)                      # (B, S)

    # Embedding lookup + layernorm (gather / elementwise glue, stays in JAX).
    emb = (params["tok_emb"][input_ids]
           + params["pos_emb"][None, :S, :]
           + params["type_emb"][0][None, None, :])
    emb = _layer_norm(emb, params["emb_g"], params["emb_b"]).astype(jnp.float32)
    x_flat = emb.reshape(BS, H)

    # Hoisted mask preprocessing (done once, not per layer inside the kernel).
    neg_bias = (1.0 - mask_f) * (-1e9)                               # (B, S)
    cnt = jnp.sum(mask_f, axis=1, keepdims=True)                     # (B, 1) >=1 (CLS)
    eye_b = jnp.eye(B, dtype=jnp.float32)
    pool_mat = (eye_b[:, :, None] * (mask_f / cnt)[None, :, :]).reshape(B, BS)

    packed = pack_layer_params(params["layers"])
    return run_fused_encoder(x_flat, neg_bias, pool_mat, packed)


# ----------------------------- pure-JAX reference ------------------------------
def reference_forward(input_ids, attention_mask, params):
    mask_f = attention_mask.astype(jnp.float32)
    emb = (params["tok_emb"][input_ids]
           + params["pos_emb"][None, :S, :]
           + params["type_emb"][0][None, None, :])
    x = _layer_norm(emb, params["emb_g"], params["emb_b"])

    for p in params["layers"]:
        q = x @ p["wq"] + p["bq"]
        k = x @ p["wk"] + p["bk"]
        v = x @ p["wv"] + p["bv"]
        q = q.reshape(B, S, NH, HD)
        k = k.reshape(B, S, NH, HD)
        v = v.reshape(B, S, NH, HD)
        scores = jnp.einsum("bqnd,bknd->bnqk", q, k) / jnp.sqrt(jnp.float32(HD))
        scores = scores + (1.0 - mask_f)[:, None, None, :] * (-1e9)
        probs = jax.nn.softmax(scores, axis=-1)
        ctx = jnp.einsum("bnqk,bknd->bqnd", probs, v).reshape(B, S, H)
        attn_out = ctx @ p["wo"] + p["bo"]
        h1 = _layer_norm(x + attn_out, p["g1"], p["be1"])
        ff = jax.nn.gelu(h1 @ p["w1"] + p["bb1"], approximate=True)
        ff = ff @ p["w2"] + p["bb2"]
        x = _layer_norm(h1 + ff, p["g2"], p["be2"])

    pooled = jnp.sum(x * mask_f[:, :, None], axis=1) / jnp.sum(mask_f, axis=1)[:, None]
    norm = jnp.maximum(jnp.linalg.norm(pooled, axis=1, keepdims=True), 1e-9)
    return pooled / norm


# ----------------------------- deterministic params ----------------------------
def init_params(key):
    def nrm(k, shape, scale=0.02):
        return (scale * jax.random.normal(k, shape)).astype(jnp.float32)

    keys = jax.random.split(key, 4 + NLAYERS)
    params = {
        "tok_emb": nrm(keys[0], (VOCAB, H)),
        "pos_emb": nrm(keys[1], (S, H)),
        "type_emb": nrm(keys[2], (2, H)),
        "emb_g": jnp.ones((1, H), jnp.float32),
        "emb_b": jnp.zeros((1, H), jnp.float32),
        "layers": [],
    }
    for li in range(NLAYERS):
        lk = jax.random.split(keys[4 + li], 8)
        layer = {
            "wq": nrm(lk[0], (H, H)), "bq": jnp.zeros((1, H), jnp.float32),
            "wk": nrm(lk[1], (H, H)), "bk": jnp.zeros((1, H), jnp.float32),
            "wv": nrm(lk[2], (H, H)), "bv": jnp.zeros((1, H), jnp.float32),
            "wo": nrm(lk[3], (H, H)), "bo": nrm(lk[4], (1, H)),
            "g1": jnp.ones((1, H), jnp.float32), "be1": jnp.zeros((1, H), jnp.float32),
            "w1": nrm(lk[5], (H, F)), "bb1": nrm(lk[6], (1, F)),
            "w2": nrm(lk[7], (F, H)), "bb2": jnp.zeros((1, H), jnp.float32),
            "g2": jnp.ones((1, H), jnp.float32), "be2": jnp.zeros((1, H), jnp.float32),
        }
        params["layers"].append(layer)
    return params


# ----------------------------- main --------------------------------------------
if __name__ == "__main__":
    root = jax.random.PRNGKey(0)
    k_param, k_ids = jax.random.split(root)
    params = init_params(k_param)

    # Synthetic tokenized batch (what the HF tokenizer would produce):
    # [CLS] t t ... [SEP] pad pad, with per-example lengths.
    lengths = jnp.array([S, 5], dtype=jnp.int32)
    ids = jax.random.randint(k_ids, (B, S), 3, VOCAB, dtype=jnp.int32)
    pos = jnp.arange(S, dtype=jnp.int32)[None, :]
    attention_mask = (pos < lengths[:, None]).astype(jnp.int32)
    ids = jnp.where(attention_mask == 1, ids, PAD_ID)
    ids = ids.at[:, 0].set(CLS_ID)
    ids = jnp.where(pos == (lengths[:, None] - 1), SEP_ID, ids)

    emb = jax.jit(functools.partial(star_encoder_forward, params=params))(
        ids, attention_mask)
    emb = jax.block_until_ready(emb)

    ref = reference_forward(ids, attention_mask, params)

    assert emb.shape == (B, H), emb.shape
    assert bool(jnp.all(jnp.isfinite(emb)))
    # unit-norm rows (the module L2-normalizes the pooled embedding)
    norms = jnp.linalg.norm(emb, axis=1)
    assert bool(jnp.all(jnp.abs(norms - 1.0) < 1e-3)), norms
    assert bool(jnp.allclose(emb, ref, atol=1e-2, rtol=1e-2))

    print("KERNEL_OK")
</pallas_src>

<mosaic_0001>
module attributes {stable_mosaic.version = 11 : i64} {
  func.func @fused_encoder_kernel(%arg0: i32, %arg1: memref<16x32xf32, #tpu.memory_space<vmem>>, %arg2: memref<2x8xf32, #tpu.memory_space<vmem>>, %arg3: memref<2x16xf32, #tpu.memory_space<vmem>>, %arg4: memref<1x32x96xf32, #tpu.memory_space<vmem>>, %arg5: memref<1x32x32xf32, #tpu.memory_space<vmem>>, %arg6: memref<1x32x64xf32, #tpu.memory_space<vmem>>, %arg7: memref<1x64x32xf32, #tpu.memory_space<vmem>>, %arg8: memref<1x1x96xf32, #tpu.memory_space<vmem>>, %arg9: memref<1x1x64xf32, #tpu.memory_space<vmem>>, %arg10: memref<1x6x32xf32, #tpu.memory_space<vmem>>, %arg11: memref<2x32xf32, #tpu.memory_space<vmem>>, %arg12: memref<16x32xf32, #tpu.memory_space<vmem>>, %arg13: memref<16x32xf32, #tpu.memory_space<vmem>>) attributes {dimension_semantics = [#tpu.dimension_semantics<arbitrary>], iteration_bounds = array<i64: 2>, scalar_prefetch = 0 : i64, scratch_operands = 2 : i64, tpu.core_type = #tpu.core_type<tc>, window_params = [{pipeline_mode = #tpu.pipeline_mode<synchronous>, transform_indices = @transform_0, window_bounds = array<i64: 16, 32>}, {pipeline_mode = #tpu.pipeline_mode<synchronous>, transform_indices = @transform_1, window_bounds = array<i64: 2, 8>}, {pipeline_mode = #tpu.pipeline_mode<synchronous>, transform_indices = @transform_2, window_bounds = array<i64: 2, 16>}, {transform_indices = @transform_3, window_bounds = array<i64: 1, 32, 96>}, {transform_indices = @transform_4, window_bounds = array<i64: 1, 32, 32>}, {transform_indices = @transform_5, window_bounds = array<i64: 1, 32, 64>}, {transform_indices = @transform_6, window_bounds = array<i64: 1, 64, 32>}, {transform_indices = @transform_7, window_bounds = array<i64: 1, 1, 96>}, {transform_indices = @transform_8, window_bounds = array<i64: 1, 1, 64>}, {transform_indices = @transform_9, window_bounds = array<i64: 1, 6, 32>}, {pipeline_mode = #tpu.pipeline_mode<synchronous>, transform_indices = @transform_10, window_bounds = array<i64: 2, 32>}]} {
    %c0_i32 = arith.constant 0 : i32
    %0 = arith.cmpi eq, %arg0, %c0_i32 : i32
    %1 = arith.extui %0 : i1 to i32
    %c0_i32_0 = arith.constant 0 : i32
    %2 = arith.cmpi ne, %1, %c0_i32_0 : i32
    scf.if %2 {
      %c0_74 = arith.constant 0 : index
      %c0_75 = arith.constant 0 : index
      %182 = vector.load %arg1[%c0_74, %c0_75] : memref<16x32xf32, #tpu.memory_space<vmem>>, vector<16x32xf32>
      %c0_76 = arith.constant 0 : index
      %c0_77 = arith.constant 0 : index
      %183 = vector.load %arg12[%c0_76, %c0_77] : memref<16x32xf32, #tpu.memory_space<vmem>>, vector<16x32xf32>
      tpu.vector_store %arg12[%c0_76, %c0_77], %182 {strides = array<i32>} : memref<16x32xf32, #tpu.memory_space<vmem>>, vector<16x32xf32>,
    } else {
    }
    %c0 = arith.constant 0 : index
    %c0_1 = arith.constant 0 : index
    %3 = vector.load %arg12[%c0, %c0_1] : memref<16x32xf32, #tpu.memory_space<vmem>>, vector<16x32xf32>
    %c0_2 = arith.constant 0 : index
    %c0_3 = arith.constant 0 : index
    %c0_4 = arith.constant 0 : index
    %4 = vector.load %arg10[%c0_2, %c0_3, %c0_4] : memref<1x6x32xf32, #tpu.memory_space<vmem>>, vector<1x6x32xf32>
    %5 = vector.shape_cast %4 : vector<1x6x32xf32> to vector<6x32xf32>
    %c0_5 = arith.constant 0 : index
    %c0_6 = arith.constant 0 : index
    %c0_7 = arith.constant 0 : index
    %6 = vector.load %arg4[%c0_5, %c0_6, %c0_7] : memref<1x32x96xf32, #tpu.memory_space<vmem>>, vector<1x32x96xf32>
    %7 = vector.shape_cast %6 : vector<1x32x96xf32> to vector<32x96xf32>
    %cst = arith.constant dense<0.000000e+00> : vector<16x96xf32>
    %8 = tpu.matmul %3, %7, %cst {dimension_numbers = #tpu.dot_dimension_numbers<[1], [0], [0], [1], [0, 0, 1, 1], [], []>} : vector<16x32xf32>, vector<32x96xf32>, vector<16x96xf32> -> vector<16x96xf32>
    %c0_8 = arith.constant 0 : index
    %c0_9 = arith.constant 0 : index
    %c0_10 = arith.constant 0 : index
    %9 = vector.load %arg8[%c0_8, %c0_9, %c0_10] : memref<1x1x96xf32, #tpu.memory_space<vmem>>, vector<1x1x96xf32>
    %10 = vector.shape_cast %9 : vector<1x1x96xf32> to vector<1x96xf32>
    %11 = vector.broadcast %10 : vector<1x96xf32> to vector<16x96xf32>
    %12 = arith.addf %8, %11 : vector<16x96xf32>
    %c0_11 = arith.constant 0 : index
    %c0_12 = arith.constant 0 : index
    %13 = vector.load %arg2[%c0_11, %c0_12] : memref<2x8xf32, #tpu.memory_space<vmem>>, vector<1x8xf32>
    %14 = vector.extract_strided_slice %12 {offsets = [0, 0], sizes = [8, 16], strides = [1, 1]} : vector<16x96xf32> to vector<8x16xf32>
    %15 = vector.extract_strided_slice %12 {offsets = [0, 32], sizes = [8, 16], strides = [1, 1]} : vector<16x96xf32> to vector<8x16xf32>
    %16 = vector.extract_strided_slice %12 {offsets = [0, 64], sizes = [8, 16], strides = [1, 1]} : vector<16x96xf32> to vector<8x16xf32>
    %cst_13 = arith.constant dense<0.000000e+00> : vector<8x8xf32>
    %17 = tpu.matmul %14, %15, %cst_13 {dimension_numbers = #tpu.dot_dimension_numbers<[1], [1], [0], [0], [0, 0, 1, 0], [], []>} : vector<8x16xf32>, vector<8x16xf32>, vector<8x8xf32> -> vector<8x8xf32>
    %cst_14 = arith.constant 2.500000e-01 : f32
    %18 = vector.broadcast %cst_14 : f32 to vector<8x8xf32>
    %19 = arith.mulf %17, %18 : vector<8x8xf32>
    %20 = vector.broadcast %13 : vector<1x8xf32> to vector<8x8xf32>
    %21 = arith.addf %19, %20 : vector<8x8xf32>
    %cst_15 = arith.constant dense<0xFF800000> : vector<8xf32>
    %22 = vector.multi_reduction <maximumf>, %21, %cst_15 [1] : vector<8x8xf32> to vector<8xf32>
    %23 = vector.shape_cast %22 : vector<8xf32> to vector<8x1xf32>
    %24 = vector.broadcast %23 : vector<8x1xf32> to vector<8x8xf32>
    %25 = arith.subf %21, %24 : vector<8x8xf32>
    %26 = math.exp %25 : vector<8x8xf32>
    %cst_16 = arith.constant dense<0.000000e+00> : vector<8xf32>
    %27 = vector.multi_reduction <add>, %26, %cst_16 [1] : vector<8x8xf32> to vector<8xf32>
    %28 = vector.shape_cast %27 : vector<8xf32> to vector<8x1xf32>
    %29 = tpu.reciprocal %28 {approx = true} : vector<8x1xf32> -> vector<8x1xf32>
    %30 = vector.broadcast %29 : vector<8x1xf32> to vector<8x8xf32>
    %31 = arith.mulf %26, %30 : vector<8x8xf32>
    %cst_17 = arith.constant dense<0.000000e+00> : vector<8x16xf32>
    %32 = tpu.matmul %31, %16, %cst_17 {dimension_numbers = #tpu.dot_dimension_numbers<[1], [0], [0], [1], [0, 0, 1, 1], [], []>} : vector<8x8xf32>, vector<8x16xf32>, vector<8x16xf32> -> vector<8x16xf32>
    %c0_18 = arith.constant 0 : index
    %c0_19 = arith.constant 0 : index
    %33 = vector.load %arg13[%c0_18, %c0_19] : memref<16x32xf32, #tpu.memory_space<vmem>>, vector<8x16xf32>
    tpu.vector_store %arg13[%c0_18, %c0_19], %32 {strides = array<i32>} : memref<16x32xf32, #tpu.memory_space<vmem>>, vector<8x16xf32>,
    %34 = vector.extract_strided_slice %12 {offsets = [0, 16], sizes = [8, 16], strides = [1, 1]} : vector<16x96xf32> to vector<8x16xf32>
    %35 = vector.extract_strided_slice %12 {offsets = [0, 48], sizes = [8, 16], strides = [1, 1]} : vector<16x96xf32> to vector<8x16xf32>
    %36 = vector.extract_strided_slice %12 {offsets = [0, 80], sizes = [8, 16], strides = [1, 1]} : vector<16x96xf32> to vector<8x16xf32>
    %cst_20 = arith.constant dense<0.000000e+00> : vector<8x8xf32>
    %37 = tpu.matmul %34, %35, %cst_20 {dimension_numbers = #tpu.dot_dimension_numbers<[1], [1], [0], [0], [0, 0, 1, 0], [], []>} : vector<8x16xf32>, vector<8x16xf32>, vector<8x8xf32> -> vector<8x8xf32>
    %cst_21 = arith.constant 2.500000e-01 : f32
    %38 = vector.broadcast %cst_21 : f32 to vector<8x8xf32>
    %39 = arith.mulf %37, %38 : vector<8x8xf32>
    %40 = vector.broadcast %13 : vector<1x8xf32> to vector<8x8xf32>
    %41 = arith.addf %39, %40 : vector<8x8xf32>
    %cst_22 = arith.constant dense<0xFF800000> : vector<8xf32>
    %42 = vector.multi_reduction <maximumf>, %41, %cst_22 [1] : vector<8x8xf32> to vector<8xf32>
    %43 = vector.shape_cast %42 : vector<8xf32> to vector<8x1xf32>
    %44 = vector.broadcast %43 : vector<8x1xf32> to vector<8x8xf32>
    %45 = arith.subf %41, %44 : vector<8x8xf32>
    %46 = math.exp %45 : vector<8x8xf32>
    %cst_23 = arith.constant dense<0.000000e+00> : vector<8xf32>
    %47 = vector.multi_reduction <add>, %46, %cst_23 [1] : vector<8x8xf32> to vector<8xf32>
    %48 = vector.shape_cast %47 : vector<8xf32> to vector<8x1xf32>
    %49 = tpu.reciprocal %48 {approx = true} : vector<8x1xf32> -> vector<8x1xf32>
    %50 = vector.broadcast %49 : vector<8x1xf32> to vector<8x8xf32>
    %51 = arith.mulf %46, %50 : vector<8x8xf32>
    %cst_24 = arith.constant dense<0.000000e+00> : vector<8x16xf32>
    %52 = tpu.matmul %51, %36, %cst_24 {dimension_numbers = #tpu.dot_dimension_numbers<[1], [0], [0], [1], [0, 0, 1, 1], [], []>} : vector<8x8xf32>, vector<8x16xf32>, vector<8x16xf32> -> vector<8x16xf32>
    %c0_25 = arith.constant 0 : index
    %c16 = arith.constant 16 : index
    %53 = vector.load %arg13[%c0_25, %c16] : memref<16x32xf32, #tpu.memory_space<vmem>>, vector<8x16xf32>
    tpu.vector_store %arg13[%c0_25, %c16], %52 {strides = array<i32>} : memref<16x32xf32, #tpu.memory_space<vmem>>, vector<8x16xf32>,
    %c1 = arith.constant 1 : index
    %c0_26 = arith.constant 0 : index
    %54 = vector.load %arg2[%c1, %c0_26] : memref<2x8xf32, #tpu.memory_space<vmem>>, vector<1x8xf32>
    %55 = vector.extract_strided_slice %12 {offsets = [8, 0], sizes = [8, 16], strides = [1, 1]} : vector<16x96xf32> to vector<8x16xf32>
    %56 = vector.extract_strided_slice %12 {offsets = [8, 32], sizes = [8, 16], strides = [1, 1]} : vector<16x96xf32> to vector<8x16xf32>
    %57 = vector.extract_strided_slice %12 {offsets = [8, 64], sizes = [8, 16], strides = [1, 1]} : vector<16x96xf32> to vector<8x16xf32>
    %cst_27 = arith.constant dense<0.000000e+00> : vector<8x8xf32>
    %58 = tpu.matmul %55, %56, %cst_27 {dimension_numbers = #tpu.dot_dimension_numbers<[1], [1], [0], [0], [0, 0, 1, 0], [], []>} : vector<8x16xf32>, vector<8x16xf32>, vector<8x8xf32> -> vector<8x8xf32>
    %cst_28 = arith.constant 2.500000e-01 : f32
    %59 = vector.broadcast %cst_28 : f32 to vector<8x8xf32>
    %60 = arith.mulf %58, %59 : vector<8x8xf32>
    %61 = vector.broadcast %54 : vector<1x8xf32> to vector<8x8xf32>
    %62 = arith.addf %60, %61 : vector<8x8xf32>
    %cst_29 = arith.constant dense<0xFF800000> : vector<8xf32>
    %63 = vector.multi_reduction <maximumf>, %62, %cst_29 [1] : vector<8x8xf32> to vector<8xf32>
    %64 = vector.shape_cast %63 : vector<8xf32> to vector<8x1xf32>
    %65 = vector.broadcast %64 : vector<8x1xf32> to vector<8x8xf32>
    %66 = arith.subf %62, %65 : vector<8x8xf32>
    %67 = math.exp %66 : vector<8x8xf32>
    %cst_30 = arith.constant dense<0.000000e+00> : vector<8xf32>
    %68 = vector.multi_reduction <add>, %67, %cst_30 [1] : vector<8x8xf32> to vector<8xf32>
    %69 = vector.shape_cast %68 : vector<8xf32> to vector<8x1xf32>
    %70 = tpu.reciprocal %69 {approx = true} : vector<8x1xf32> -> vector<8x1xf32>
    %71 = vector.broadcast %70 : vector<8x1xf32> to vector<8x8xf32>
    %72 = arith.mulf %67, %71 : vector<8x8xf32>
    %cst_31 = arith.constant dense<0.000000e+00> : vector<8x16xf32>
    %73 = tpu.matmul %72, %57, %cst_31 {dimension_numbers = #tpu.dot_dimension_numbers<[1], [0], [0], [1], [0, 0, 1, 1], [], []>} : vector<8x8xf32>, vector<8x16xf32>, vector<8x16xf32> -> vector<8x16xf32>
    %c8 = arith.constant 8 : index
    %c0_32 = arith.constant 0 : index
    %74 = vector.load %arg13[%c8, %c0_32] : memref<16x32xf32, #tpu.memory_space<vmem>>, vector<8x16xf32>
    tpu.vector_store %arg13[%c8, %c0_32], %73 {strides = array<i32>} : memref<16x32xf32, #tpu.memory_space<vmem>>, vector<8x16xf32>,
    %75 = vector.extract_strided_slice %12 {offsets = [8, 16], sizes = [8, 16], strides = [1, 1]} : vector<16x96xf32> to vector<8x16xf32>
    %76 = vector.extract_strided_slice %12 {offsets = [8, 48], sizes = [8, 16], strides = [1, 1]} : vector<16x96xf32> to vector<8x16xf32>
    %77 = vector.extract_strided_slice %12 {offsets = [8, 80], sizes = [8, 16], strides = [1, 1]} : vector<16x96xf32> to vector<8x16xf32>
    %cst_33 = arith.constant dense<0.000000e+00> : vector<8x8xf32>
    %78 = tpu.matmul %75, %76, %cst_33 {dimension_numbers = #tpu.dot_dimension_numbers<[1], [1], [0], [0], [0, 0, 1, 0], [], []>} : vector<8x16xf32>, vector<8x16xf32>, vector<8x8xf32> -> vector<8x8xf32>
    %cst_34 = arith.constant 2.500000e-01 : f32
    %79 = vector.broadcast %cst_34 : f32 to vector<8x8xf32>
    %80 = arith.mulf %78, %79 : vector<8x8xf32>
    %81 = vector.broadcast %54 : vector<1x8xf32> to vector<8x8xf32>
    %82 = arith.addf %80, %81 : vector<8x8xf32>
    %cst_35 = arith.constant dense<0xFF800000> : vector<8xf32>
    %83 = vector.multi_reduction <maximumf>, %82, %cst_35 [1] : vector<8x8xf32> to vector<8xf32>
    %84 = vector.shape_cast %83 : vector<8xf32> to vector<8x1xf32>
    %85 = vector.broadcast %84 : vector<8x1xf32> to vector<8x8xf32>
    %86 = arith.subf %82, %85 : vector<8x8xf32>
    %87 = math.exp %86 : vector<8x8xf32>
    %cst_36 = arith.constant dense<0.000000e+00> : vector<8xf32>
    %88 = vector.multi_reduction <add>, %87, %cst_36 [1] : vector<8x8xf32> to vector<8xf32>
    %89 = vector.shape_cast %88 : vector<8xf32> to vector<8x1xf32>
    %90 = tpu.reciprocal %89 {approx = true} : vector<8x1xf32> -> vector<8x1xf32>
    %91 = vector.broadcast %90 : vector<8x1xf32> to vector<8x8xf32>
    %92 = arith.mulf %87, %91 : vector<8x8xf32>
    %cst_37 = arith.constant dense<0.000000e+00> : vector<8x16xf32>
    %93 = tpu.matmul %92, %77, %cst_37 {dimension_numbers = #tpu.dot_dimension_numbers<[1], [0], [0], [1], [0, 0, 1, 1], [], []>} : vector<8x8xf32>, vector<8x16xf32>, vector<8x16xf32> -> vector<8x16xf32>
    %c8_38 = arith.constant 8 : index
    %c16_39 = arith.constant 16 : index
    %94 = vector.load %arg13[%c8_38, %c16_39] : memref<16x32xf32, #tpu.memory_space<vmem>>, vector<8x16xf32>
    tpu.vector_store %arg13[%c8_38, %c16_39], %93 {strides = array<i32>} : memref<16x32xf32, #tpu.memory_space<vmem>>, vector<8x16xf32>,
    %c0_40 = arith.constant 0 : index
    %c0_41 = arith.constant 0 : index
    %95 = vector.load %arg13[%c0_40, %c0_41] : memref<16x32xf32, #tpu.memory_space<vmem>>, vector<16x32xf32>
    %c0_42 = arith.constant 0 : index
    %c0_43 = arith.constant 0 : index
    %c0_44 = arith.constant 0 : index
    %96 = vector.load %arg5[%c0_42, %c0_43, %c0_44] : memref<1x32x32xf32, #tpu.memory_space<vmem>>, vector<1x32x32xf32>
    %97 = vector.shape_cast %96 : vector<1x32x32xf32> to vector<32x32xf32>
    %cst_45 = arith.constant dense<0.000000e+00> : vector<16x32xf32>
    %98 = tpu.matmul %95, %97, %cst_45 {dimension_numbers = #tpu.dot_dimension_numbers<[1], [0], [0], [1], [0, 0, 1, 1], [], []>} : vector<16x32xf32>, vector<32x32xf32>, vector<16x32xf32> -> vector<16x32xf32>
    %99 = vector.extract_strided_slice %5 {offsets = [0, 0], sizes = [1, 32], strides = [1, 1]} : vector<6x32xf32> to vector<1x32xf32>
    %100 = vector.broadcast %99 : vector<1x32xf32> to vector<16x32xf32>
    %101 = arith.addf %98, %100 : vector<16x32xf32>
    %102 = arith.addf %3, %101 : vector<16x32xf32>
    %103 = vector.extract_strided_slice %5 {offsets = [1, 0], sizes = [1, 32], strides = [1, 1]} : vector<6x32xf32> to vector<1x32xf32>
    %104 = vector.extract_strided_slice %5 {offsets = [2, 0], sizes = [1, 32], strides = [1, 1]} : vector<6x32xf32> to vector<1x32xf32>
    %cst_46 = arith.constant dense<0.000000e+00> : vector<16xf32>
    %105 = vector.multi_reduction <add>, %102, %cst_46 [1] : vector<16x32xf32> to vector<16xf32>
    %106 = vector.shape_cast %105 : vector<16xf32> to vector<16x1xf32>
    %cst_47 = arith.constant 3.200000e+01 : f32
    %107 = vector.broadcast %cst_47 : f32 to vector<16x1xf32>
    %108 = arith.divf %106, %107 : vector<16x1xf32>
    %109 = vector.broadcast %108 : vector<16x1xf32> to vector<16x32xf32>
    %110 = arith.subf %102, %109 : vector<16x32xf32>
    %111 = arith.mulf %110, %110 : vector<16x32xf32>
    %cst_48 = arith.constant dense<0.000000e+00> : vector<16xf32>
    %112 = vector.multi_reduction <add>, %111, %cst_48 [1] : vector<16x32xf32> to vector<16xf32>
    %113 = vector.shape_cast %112 : vector<16xf32> to vector<16x1xf32>
    %cst_49 = arith.constant 3.200000e+01 : f32
    %114 = vector.broadcast %cst_49 : f32 to vector<16x1xf32>
    %115 = arith.divf %113, %114 : vector<16x1xf32>
    %116 = vector.broadcast %108 : vector<16x1xf32> to vector<16x32xf32>
    %117 = arith.subf %102, %116 : vector<16x32xf32>
    %cst_50 = arith.constant 9.99999996E-13 : f32
    %118 = vector.broadcast %cst_50 : f32 to vector<16x1xf32>
    %119 = arith.addf %115, %118 : vector<16x1xf32>
    %120 = math.rsqrt %119 : vector<16x1xf32>
    %121 = vector.broadcast %120 : vector<16x1xf32> to vector<16x32xf32>
    %122 = arith.mulf %117, %121 : vector<16x32xf32>
    %123 = vector.broadcast %103 : vector<1x32xf32> to vector<16x32xf32>
    %124 = arith.mulf %122, %123 : vector<16x32xf32>
    %125 = vector.broadcast %104 : vector<1x32xf32> to vector<16x32xf32>
    %126 = arith.addf %124, %125 : vector<16x32xf32>
    %c0_51 = arith.constant 0 : index
    %c0_52 = arith.constant 0 : index
    %c0_53 = arith.constant 0 : index
    %127 = vector.load %arg6[%c0_51, %c0_52, %c0_53] : memref<1x32x64xf32, #tpu.memory_space<vmem>>, vector<1x32x64xf32>
    %128 = vector.shape_cast %127 : vector<1x32x64xf32> to vector<32x64xf32>
    %cst_54 = arith.constant dense<0.000000e+00> : vector<16x64xf32>
    %129 = tpu.matmul %126, %128, %cst_54 {dimension_numbers = #tpu.dot_dimension_numbers<[1], [0], [0], [1], [0, 0, 1, 1], [], []>} : vector<16x32xf32>, vector<32x64xf32>, vector<16x64xf32> -> vector<16x64xf32>
    %c0_55 = arith.constant 0 : index
    %c0_56 = arith.constant 0 : index
    %c0_57 = arith.constant 0 : index
    %130 = vector.load %arg9[%c0_55, %c0_56, %c0_57] : memref<1x1x64xf32, #tpu.memory_space<vmem>>, vector<1x1x64xf32>
    %131 = vector.shape_cast %130 : vector<1x1x64xf32> to vector<1x64xf32>
    %132 = vector.broadcast %131 : vector<1x64xf32> to vector<16x64xf32>
    %133 = arith.addf %129, %132 : vector<16x64xf32>
    %134 = arith.mulf %133, %133 : vector<16x64xf32>
    %135 = arith.mulf %133, %134 : vector<16x64xf32>
    %cst_58 = arith.constant 4.471500e-02 : f32
    %136 = vector.broadcast %cst_58 : f32 to vector<16x64xf32>
    %137 = arith.mulf %136, %135 : vector<16x64xf32>
    %138 = arith.addf %133, %137 : vector<16x64xf32>
    %cst_59 = arith.constant 0.797884583 : f32
    %139 = vector.broadcast %cst_59 : f32 to vector<16x64xf32>
    %140 = arith.mulf %139, %138 : vector<16x64xf32>
    %141 = math.tanh %140 : vector<16x64xf32>
    %cst_60 = arith.constant 1.000000e+00 : f32
    %142 = vector.broadcast %cst_60 : f32 to vector<16x64xf32>
    %143 = arith.addf %142, %141 : vector<16x64xf32>
    %cst_61 = arith.constant 5.000000e-01 : f32
    %144 = vector.broadcast %cst_61 : f32 to vector<16x64xf32>
    %145 = arith.mulf %144, %143 : vector<16x64xf32>
    %146 = arith.mulf %133, %145 : vector<16x64xf32>
    %c0_62 = arith.constant 0 : index
    %c0_63 = arith.constant 0 : index
    %c0_64 = arith.constant 0 : index
    %147 = vector.load %arg7[%c0_62, %c0_63, %c0_64] : memref<1x64x32xf32, #tpu.memory_space<vmem>>, vector<1x64x32xf32>
    %148 = vector.shape_cast %147 : vector<1x64x32xf32> to vector<64x32xf32>
    %cst_65 = arith.constant dense<0.000000e+00> : vector<16x32xf32>
    %149 = tpu.matmul %146, %148, %cst_65 {dimension_numbers = #tpu.dot_dimension_numbers<[1], [0], [0], [1], [0, 0, 1, 1], [], []>} : vector<16x64xf32>, vector<64x32xf32>, vector<16x32xf32> -> vector<16x32xf32>
    %150 = vector.extract_strided_slice %5 {offsets = [3, 0], sizes = [1, 32], strides = [1, 1]} : vector<6x32xf32> to vector<1x32xf32>
    %151 = vector.broadcast %150 : vector<1x32xf32> to vector<16x32xf32>
    %152 = arith.addf %149, %151 : vector<16x32xf32>
    %153 = arith.addf %126, %152 : vector<16x32xf32>
    %154 = vector.extract_strided_slice %5 {offsets = [4, 0], sizes = [1, 32], strides = [1, 1]} : vector<6x32xf32> to vector<1x32xf32>
    %155 = vector.extract_strided_slice %5 {offsets = [5, 0], sizes = [1, 32], strides = [1, 1]} : vector<6x32xf32> to vector<1x32xf32>
    %cst_66 = arith.constant dense<0.000000e+00> : vector<16xf32>
    %156 = vector.multi_reduction <add>, %153, %cst_66 [1] : vector<16x32xf32> to vector<16xf32>
    %157 = vector.shape_cast %156 : vector<16xf32> to vector<16x1xf32>
    %cst_67 = arith.constant 3.200000e+01 : f32
    %158 = vector.broadcast %cst_67 : f32 to vector<16x1xf32>
    %159 = arith.divf %157, %158 : vector<16x1xf32>
    %160 = vector.broadcast %159 : vector<16x1xf32> to vector<16x32xf32>
    %161 = arith.subf %153, %160 : vector<16x32xf32>
    %162 = arith.mulf %161, %161 : vector<16x32xf32>
    %cst_68 = arith.constant dense<0.000000e+00> : vector<16xf32>
    %163 = vector.multi_reduction <add>, %162, %cst_68 [1] : vector<16x32xf32> to vector<16xf32>
    %164 = vector.shape_cast %163 : vector<16xf32> to vector<16x1xf32>
    %cst_69 = arith.constant 3.200000e+01 : f32
    %165 = vector.broadcast %cst_69 : f32 to vector<16x1xf32>
    %166 = arith.divf %164, %165 : vector<16x1xf32>
    %167 = vector.broadcast %159 : vector<16x1xf32> to vector<16x32xf32>
    %168 = arith.subf %153, %167 : vector<16x32xf32>
    %cst_70 = arith.constant 9.99999996E-13 : f32
    %169 = vector.broadcast %cst_70 : f32 to vector<16x1xf32>
    %170 = arith.addf %166, %169 : vector<16x1xf32>
    %171 = math.rsqrt %170 : vector<16x1xf32>
    %172 = vector.broadcast %171 : vector<16x1xf32> to vector<16x32xf32>
    %173 = arith.mulf %168, %172 : vector<16x32xf32>
    %174 = vector.broadcast %154 : vector<1x32xf32> to vector<16x32xf32>
    %175 = arith.mulf %173, %174 : vector<16x32xf32>
    %176 = vector.broadcast %155 : vector<1x32xf32> to vector<16x32xf32>
    %177 = arith.addf %175, %176 : vector<16x32xf32>
    %c0_71 = arith.constant 0 : index
    %c0_72 = arith.constant 0 : index
    %178 = vector.load %arg12[%c0_71, %c0_72] : memref<16x32xf32, #tpu.memory_space<vmem>>, vector<16x32xf32>
    tpu.vector_store %arg12[%c0_71, %c0_72], %177 {strides = array<i32>} : memref<16x32xf32, #tpu.memory_space<vmem>>, vector<16x32xf32>,
    %c1_i32 = arith.constant 1 : i32
    %179 = arith.cmpi eq, %arg0, %c1_i32 : i32
    %180 = arith.extui %179 : i1 to i32
    %c0_i32_73 = arith.constant 0 : i32
    %181 = arith.cmpi ne, %180, %c0_i32_73 : i32
    scf.if %181 {
      %c0_74 = arith.constant 0 : index
      %c0_75 = arith.constant 0 : index
      %182 = vector.load %arg3[%c0_74, %c0_75] : memref<2x16xf32, #tpu.memory_space<vmem>>, vector<2x16xf32>
      %cst_76 = arith.constant dense<0.000000e+00> : vector<2x32xf32>
      %183 = tpu.matmul %182, %177, %cst_76 {dimension_numbers = #tpu.dot_dimension_numbers<[1], [0], [0], [1], [0, 0, 1, 1], [], []>} : vector<2x16xf32>, vector<16x32xf32>, vector<2x32xf32> -> vector<2x32xf32>
      %184 = arith.mulf %183, %183 : vector<2x32xf32>
      %cst_77 = arith.constant dense<0.000000e+00> : vector<2xf32>
      %185 = vector.multi_reduction <add>, %184, %cst_77 [1] : vector<2x32xf32> to vector<2xf32>
      %186 = vector.shape_cast %185 : vector<2xf32> to vector<2x1xf32>
      %cst_78 = arith.constant 1.000000e-18 : f32
      %187 = vector.broadcast %cst_78 : f32 to vector<2x1xf32>
      %188 = arith.maximumf %186, %187 : vector<2x1xf32>
      %189 = math.rsqrt %188 : vector<2x1xf32>
      %190 = vector.broadcast %189 : vector<2x1xf32> to vector<2x32xf32>
      %191 = arith.mulf %183, %190 : vector<2x32xf32>
      %c0_79 = arith.constant 0 : index
      %c0_80 = arith.constant 0 : index
      %192 = vector.load %arg11[%c0_79, %c0_80] : memref<2x32xf32, #tpu.memory_space<vmem>>, vector<2x32xf32>
      tpu.vector_store %arg11[%c0_79, %c0_80], %191 {strides = array<i32>} : memref<2x32xf32, #tpu.memory_space<vmem>>, vector<2x32xf32>,
    } else {
    }
    return
  }
  func.func @transform_0(%arg0: i32) -> (i32, i32) {
    %c0_i32 = arith.constant 0 : i32
    %c0_i32_0 = arith.constant 0 : i32
    %c0_i32_1 = arith.constant 0 : i32
    return %c0_i32, %c0_i32_0 : i32, i32
  }
  func.func @transform_1(%arg0: i32) -> (i32, i32) {
    %c0_i32 = arith.constant 0 : i32
    %c0_i32_0 = arith.constant 0 : i32
    %c0_i32_1 = arith.constant 0 : i32
    return %c0_i32, %c0_i32_0 : i32, i32
  }
  func.func @transform_2(%arg0: i32) -> (i32, i32) {
    %c0_i32 = arith.constant 0 : i32
    %c0_i32_0 = arith.constant 0 : i32
    %c0_i32_1 = arith.constant 0 : i32
    return %c0_i32, %c0_i32_0 : i32, i32
  }
  func.func @transform_3(%arg0: i32) -> (i32, i32, i32) {
    %c0_i32 = arith.constant 0 : i32
    %c0_i32_0 = arith.constant 0 : i32
    %c0_i32_1 = arith.constant 0 : i32
    return %arg0, %c0_i32, %c0_i32_0 : i32, i32, i32
  }
  func.func @transform_4(%arg0: i32) -> (i32, i32, i32) {
    %c0_i32 = arith.constant 0 : i32
    %c0_i32_0 = arith.constant 0 : i32
    %c0_i32_1 = arith.constant 0 : i32
    return %arg0, %c0_i32, %c0_i32_0 : i32, i32, i32
  }
  func.func @transform_5(%arg0: i32) -> (i32, i32, i32) {
    %c0_i32 = arith.constant 0 : i32
    %c0_i32_0 = arith.constant 0 : i32
    %c0_i32_1 = arith.constant 0 : i32
    return %arg0, %c0_i32, %c0_i32_0 : i32, i32, i32
  }
  func.func @transform_6(%arg0: i32) -> (i32, i32, i32) {
    %c0_i32 = arith.constant 0 : i32
    %c0_i32_0 = arith.constant 0 : i32
    %c0_i32_1 = arith.constant 0 : i32
    return %arg0, %c0_i32, %c0_i32_0 : i32, i32, i32
  }
  func.func @transform_7(%arg0: i32) -> (i32, i32, i32) {
    %c0_i32 = arith.constant 0 : i32
    %c0_i32_0 = arith.constant 0 : i32
    %c0_i32_1 = arith.constant 0 : i32
    return %arg0, %c0_i32, %c0_i32_0 : i32, i32, i32
  }
  func.func @transform_8(%arg0: i32) -> (i32, i32, i32) {
    %c0_i32 = arith.constant 0 : i32
    %c0_i32_0 = arith.constant 0 : i32
    %c0_i32_1 = arith.constant 0 : i32
    return %arg0, %c0_i32, %c0_i32_0 : i32, i32, i32
  }
  func.func @transform_9(%arg0: i32) -> (i32, i32, i32) {
    %c0_i32 = arith.constant 0 : i32
    %c0_i32_0 = arith.constant 0 : i32
    %c0_i32_1 = arith.constant 0 : i32
    return %arg0, %c0_i32, %c0_i32_0 : i32, i32, i32
  }
  func.func @transform_10(%arg0: i32) -> (i32, i32) {
    %c0_i32 = arith.constant 0 : i32
    %c0_i32_0 = arith.constant 0 : i32
    %c0_i32_1 = arith.constant 0 : i32
    return %c0_i32, %c0_i32_0 : i32, i32
  }
}

</mosaic_0001>

<llo_original>
// kernel: star_encoder_forward.1
$region0: #{star_encoder_forward.1}
  #allocation0 [shape = 'u32[]', space=smem, size = 0x4, offset = 0x4, fixed_abs, tag = 'smem constant byte address 0x4 - core index']
  #allocation1 [shape = 'u32[72,128]{1,0:T(1,128)}', space=vmem, size = 0x9000, scoped, tag = 'internal scratch']
  #allocation2 [shape = 'f32[16,32]{1,0:T(8,128)}', space=vmem, size = 0x2000, scoped, tag = 'scratch operand']
  #allocation3 [shape = 'f32[16,32]{1,0:T(8,128)}', space=vmem, size = 0x2000, scoped, tag = 'scratch operand']
  %s0 = inlined_call_operand.vmem [shape: f32[16,32], index: 0, kind: input, shape index: {}]
  %s1 = inlined_call_operand.vmem [shape: f32[2,8], index: 1, kind: input, shape index: {}]
  %s2 = inlined_call_operand.vmem [shape: f32[2,16], index: 2, kind: input, shape index: {}]
  %s3 = inlined_call_operand.hbm [shape: f32[2,32,96], index: 3, kind: input, shape index: {}]
  %s4 = inlined_call_operand.vmem [shape: f32[2,32,32], index: 4, kind: input, shape index: {}]
  %s5 = inlined_call_operand.vmem [shape: f32[2,32,64], index: 5, kind: input, shape index: {}]
  %s6 = inlined_call_operand.vmem [shape: f32[2,64,32], index: 6, kind: input, shape index: {}]
  %s7 = inlined_call_operand.vmem [shape: f32[2,1,96], index: 7, kind: input, shape index: {}]
  %s8 = inlined_call_operand.vmem [shape: f32[2,1,64], index: 8, kind: input, shape index: {}]
  %s9 = inlined_call_operand.vmem [shape: f32[2,6,32], index: 9, kind: input, shape index: {}]
  %s10 = inlined_call_operand.hbm [shape: f32[2,32], index: 10, kind: output, shape index: {}]
  %s11 = sld [smem:[#allocation0]]
  $region85: #{star_encoder_forward.1} parent=0
    _
  %s13 = ssub.s32 1, %s11
  %s14 = scalar_select 0, %s13, %s11
  $region1: #{star_encoder_forward.1} parent=0
    #allocation4 [shape = 'u8[32768]{0}', space=vmem, size = 0x8000, scoped, tag = 'input window, operand 3']
    #allocation5 [shape = 's32[2]{0}', space=sflag, size = 0x8, scoped, tag = 'scoped memory for star_encoder_forward.1']
    #allocation6 [shape = 's32[2]{0}', space=sflag, size = 0x8, scoped, tag = 'scoped memory for star_encoder_forward.1']
    #allocation7 [shape = 'u8[1024]{0}', space=vmem, size = 0x400, scoped, tag = 'output window, operand 0, single buffered']
    %15 = vsyncpa [#allocation5], 0
    %s16 = scalar_lea.sflag [#allocation5], 1
    %17 = vsyncpa %s16, 0
    %18 = vsyncpa [#allocation6], 0
    loop: start=0, step=1, limit=4
    $region2: #{star_encoder_forward.1} parent=1 // loop_pre_header
      _
    $region3: #{star_encoder_forward.1} parent=1 // loop_header
      %s20 = sphi 0, %s24
      %p21 = scmp.ge.s32.totalorder %s20, 4
      %s28 = sphi 0, %s28
      %s30 = sphi 0, %s28
      %s31 = sphi 0, %s30
      %s45 = sphi 0, %s31
      %s49 = sphi 0, %s49
      %s51 = sphi 0, %s49
      %s52 = sphi 0, %s51
      %s66 = sphi 0, %s52
      %s70 = sphi 0, %s70
      %s72 = sphi 0, %s70
      %s73 = sphi 0, %s72
      %s87 = sphi 0, %s73
      %s93 = sphi 0, %s95
      %s96 = sphi 0, %s93
      %s97 = sphi 0, %s96
      %s113 = sphi 0, %s97
      %s119 = sphi 0, %s121
      %s122 = sphi 0, %s119
      %s123 = sphi 0, %s122
      %s139 = sphi 0, %s123
      %s145 = sphi 0, %s147
      %s148 = sphi 0, %s145
      %s149 = sphi 0, %s148
      %s165 = sphi 0, %s149
      %s171 = sphi 0, %s173
      %s174 = sphi 0, %s171
      %s175 = sphi 0, %s174
      %s191 = sphi 0, %s175
      %s197 = sphi 0, %s199
      %s200 = sphi 0, %s197
      %s201 = sphi 0, %s200
      %s217 = sphi 0, %s201
      %s223 = sphi 0, %s225
      %s226 = sphi 0, %s223
      %s227 = sphi 0, %s226
      %s243 = sphi 0, %s227
      %s249 = sphi 0, %s251
      %s252 = sphi 0, %s249
      %s253 = sphi 0, %s252
      %s269 = sphi 0, %s253
      %s273 = sphi 0, %s273
      %s275 = sphi 0, %s273
      %s276 = sphi 0, %s275
      %s290 = sphi 0, %s276
    $region4: #{star_encoder_forward.1} parent=1 // loop_header_branch
      %23 = sbr.rel (%p21) target = $region8
    $region5: #{star_encoder_forward.1} parent=1 // loop_body
      %s25 = ssub.s32 %s20, 1
      %s26 = ssub.s32 %s20, 2
      %s27 = sadd.s32 %s20, 1
      %s29 = sadd.s32 %s28, 1
      %p32 = scmp.eq.s32.totalorder %s20, 1
      %p33 = scmp.ne.s32.totalorder %s28, %s30
      %p34 = scmp.eq.s32.totalorder %s20, 0
      %p35 = por %p33, %p34
      %p36 = scmp.ne.s32.totalorder %s28, %s30
      %p37 = scmp.eq.s32.totalorder %s25, 1
      %p38 = por %p36, %p37
      %p39 = scmp.ne.s32.totalorder %s30, %s31
      %p40 = scmp.eq.s32.totalorder %s25, 0
      %p41 = por %p39, %p40
      %p42 = scmp.ne.s32.totalorder %s30, %s31
      %p43 = scmp.eq.s32.totalorder %s26, 1
      %p44 = por %p42, %p43
      %p46 = scmp.ne.s32.totalorder %s31, %s45
      %p47 = scmp.eq.s32.totalorder %s26, 0
      %p48 = por %p46, %p47
      %s50 = sadd.s32 %s49, 1
      %p53 = scmp.eq.s32.totalorder %s20, 1
      %p54 = scmp.ne.s32.totalorder %s49, %s51
      %p55 = scmp.eq.s32.totalorder %s20, 0
      %p56 = por %p54, %p55
      %p57 = scmp.ne.s32.totalorder %s49, %s51
      %p58 = scmp.eq.s32.totalorder %s25, 1
      %p59 = por %p57, %p58
      %p60 = scmp.ne.s32.totalorder %s51, %s52
      %p61 = scmp.eq.s32.totalorder %s25, 0
      %p62 = por %p60, %p61
      %p63 = scmp.ne.s32.totalorder %s51, %s52
      %p64 = scmp.eq.s32.totalorder %s26, 1
      %p65 = por %p63, %p64
      %p67 = scmp.ne.s32.totalorder %s52, %s66
      %p68 = scmp.eq.s32.totalorder %s26, 0
      %p69 = por %p67, %p68
      %s71 = sadd.s32 %s70, 1
      %p74 = scmp.eq.s32.totalorder %s20, 1
      %p75 = scmp.ne.s32.totalorder %s70, %s72
      %p76 = scmp.eq.s32.totalorder %s20, 0
      %p77 = por %p75, %p76
      %p78 = scmp.ne.s32.totalorder %s70, %s72
      %p79 = scmp.eq.s32.totalorder %s25, 1
      %p80 = por %p78, %p79
      %p81 = scmp.ne.s32.totalorder %s72, %s73
      %p82 = scmp.eq.s32.totalorder %s25, 0
      %p83 = por %p81, %p82
      %p84 = scmp.ne.s32.totalorder %s72, %s73
      %p85 = scmp.eq.s32.totalorder %s26, 1
      %p86 = por %p84, %p85
      %p88 = scmp.ne.s32.totalorder %s73, %s87
      %p89 = scmp.eq.s32.totalorder %s26, 0
      %p90 = por %p88, %p89
      %s91 = ssub.s32 %s20, %s27
      %p92 = scmp.eq.s32.totalorder %s91, 0
      %s94 = sadd.s32 %s93, 1
      %s95 = scalar_select %p92, %s93, %s94
      %p98 = pneg %p92
      %p99 = scmp.eq.s32.totalorder %s20, 1
      %p100 = por %p98, %p99
      %p101 = scmp.ne.s32.totalorder %s93, %s96
      %p102 = scmp.eq.s32.totalorder %s20, 0
      %p103 = por %p101, %p102
      %p104 = scmp.ne.s32.totalorder %s93, %s96
      %p105 = scmp.eq.s32.totalorder %s25, 1
      %p106 = por %p104, %p105
      %p107 = scmp.ne.s32.totalorder %s96, %s97
      %p108 = scmp.eq.s32.totalorder %s25, 0
      %p109 = por %p107, %p108
      %p110 = scmp.ne.s32.totalorder %s96, %s97
      %p111 = scmp.eq.s32.totalorder %s26, 1
      %p112 = por %p110, %p111
      %p114 = scmp.ne.s32.totalorder %s97, %s113
      %p115 = scmp.eq.s32.totalorder %s26, 0
      %p116 = por %p114, %p115
      %s117 = ssub.s32 %s20, %s27
      %p118 = scmp.eq.s32.totalorder %s117, 0
      %s120 = sadd.s32 %s119, 1
      %s121 = scalar_select %p118, %s119, %s120
      %p124 = pneg %p118
      %p125 = scmp.eq.s32.totalorder %s20, 1
      %p126 = por %p124, %p125
      %p127 = scmp.ne.s32.totalorder %s119, %s122
      %p128 = scmp.eq.s32.totalorder %s20, 0
      %p129 = por %p127, %p128
      %p130 = scmp.ne.s32.totalorder %s119, %s122
      %p131 = scmp.eq.s32.totalorder %s25, 1
      %p132 = por %p130, %p131
      %p133 = scmp.ne.s32.totalorder %s122, %s123
      %p134 = scmp.eq.s32.totalorder %s25, 0
      %p135 = por %p133, %p134
      %p136 = scmp.ne.s32.totalorder %s122, %s123
      %p137 = scmp.eq.s32.totalorder %s26, 1
      %p138 = por %p136, %p137
      %p140 = scmp.ne.s32.totalorder %s123, %s139
      %p141 = scmp.eq.s32.totalorder %s26, 0
      %p142 = por %p140, %p141
      %s143 = ssub.s32 %s20, %s27
      %p144 = scmp.eq.s32.totalorder %s143, 0
      %s146 = sadd.s32 %s145, 1
      %s147 = scalar_select %p144, %s145, %s146
      %p150 = pneg %p144
      %p151 = scmp.eq.s32.totalorder %s20, 1
      %p152 = por %p150, %p151
      %p153 = scmp.ne.s32.totalorder %s145, %s148
      %p154 = scmp.eq.s32.totalorder %s20, 0
      %p155 = por %p153, %p154
      %p156 = scmp.ne.s32.totalorder %s145, %s148
      %p157 = scmp.eq.s32.totalorder %s25, 1
      %p158 = por %p156, %p157
      %p159 = scmp.ne.s32.totalorder %s148, %s149
      %p160 = scmp.eq.s32.totalorder %s25, 0
      %p161 = por %p159, %p160
      %p162 = scmp.ne.s32.totalorder %s148, %s149
      %p163 = scmp.eq.s32.totalorder %s26, 1
      %p164 = por %p162, %p163
      %p166 = scmp.ne.s32.totalorder %s149, %s165
      %p167 = scmp.eq.s32.totalorder %s26, 0
      %p168 = por %p166, %p167
      %s169 = ssub.s32 %s20, %s27
      %p170 = scmp.eq.s32.totalorder %s169, 0
      %s172 = sadd.s32 %s171, 1
      %s173 = scalar_select %p170, %s171, %s172
      %p176 = pneg %p170
      %p177 = scmp.eq.s32.totalorder %s20, 1
      %p178 = por %p176, %p177
      %p179 = scmp.ne.s32.totalorder %s171, %s174
      %p180 = scmp.eq.s32.totalorder %s20, 0
      %p181 = por %p179, %p180
      %p182 = scmp.ne.s32.totalorder %s171, %s174
      %p183 = scmp.eq.s32.totalorder %s25, 1
      %p184 = por %p182, %p183
      %p185 = scmp.ne.s32.totalorder %s174, %s175
      %p186 = scmp.eq.s32.totalorder %s25, 0
      %p187 = por %p185, %p186
      %p188 = scmp.ne.s32.totalorder %s174, %s175
      %p189 = scmp.eq.s32.totalorder %s26, 1
      %p190 = por %p188, %p189
      %p192 = scmp.ne.s32.totalorder %s175, %s191
      %p193 = scmp.eq.s32.totalorder %s26, 0
      %p194 = por %p192, %p193
      %s195 = ssub.s32 %s20, %s27
      %p196 = scmp.eq.s32.totalorder %s195, 0
      %s198 = sadd.s32 %s197, 1
      %s199 = scalar_select %p196, %s197, %s198
      %p202 = pneg %p196
      %p203 = scmp.eq.s32.totalorder %s20, 1
      %p204 = por %p202, %p203
      %p205 = scmp.ne.s32.totalorder %s197, %s200
      %p206 = scmp.eq.s32.totalorder %s20, 0
      %p207 = por %p205, %p206
      %p208 = scmp.ne.s32.totalorder %s197, %s200
      %p209 = scmp.eq.s32.totalorder %s25, 1
      %p210 = por %p208, %p209
      %p211 = scmp.ne.s32.totalorder %s200, %s201
      %p212 = scmp.eq.s32.totalorder %s25, 0
      %p213 = por %p211, %p212
      %p214 = scmp.ne.s32.totalorder %s200, %s201
      %p215 = scmp.eq.s32.totalorder %s26, 1
      %p216 = por %p214, %p215
      %p218 = scmp.ne.s32.totalorder %s201, %s217
      %p219 = scmp.eq.s32.totalorder %s26, 0
      %p220 = por %p218, %p219
      %s221 = ssub.s32 %s20, %s27
      %p222 = scmp.eq.s32.totalorder %s221, 0
      %s224 = sadd.s32 %s223, 1
      %s225 = scalar_select %p222, %s223, %s224
      %p228 = pneg %p222
      %p229 = scmp.eq.s32.totalorder %s20, 1
      %p230 = por %p228, %p229
      %p231 = scmp.ne.s32.totalorder %s223, %s226
      %p232 = scmp.eq.s32.totalorder %s20, 0
      %p233 = por %p231, %p232
      %p234 = scmp.ne.s32.totalorder %s223, %s226
      %p235 = scmp.eq.s32.totalorder %s25, 1
      %p236 = por %p234, %p235
      %p237 = scmp.ne.s32.totalorder %s226, %s227
      %p238 = scmp.eq.s32.totalorder %s25, 0
      %p239 = por %p237, %p238
      %p240 = scmp.ne.s32.totalorder %s226, %s227
      %p241 = scmp.eq.s32.totalorder %s26, 1
      %p242 = por %p240, %p241
      %p244 = scmp.ne.s32.totalorder %s227, %s243
      %p245 = scmp.eq.s32.totalorder %s26, 0
      %p246 = por %p244, %p245
      %s247 = ssub.s32 %s20, %s27
      %p248 = scmp.eq.s32.totalorder %s247, 0
      %s250 = sadd.s32 %s249, 1
      %s251 = scalar_select %p248, %s249, %s250
      %p254 = pneg %p248
      %p255 = scmp.eq.s32.totalorder %s20, 1
      %p256 = por %p254, %p255
      %p257 = scmp.ne.s32.totalorder %s249, %s252
      %p258 = scmp.eq.s32.totalorder %s20, 0
      %p259 = por %p257, %p258
      %p260 = scmp.ne.s32.totalorder %s249, %s252
      %p261 = scmp.eq.s32.totalorder %s25, 1
      %p262 = por %p260, %p261
      %p263 = scmp.ne.s32.totalorder %s252, %s253
      %p264 = scmp.eq.s32.totalorder %s25, 0
      %p265 = por %p263, %p264
      %p266 = scmp.ne.s32.totalorder %s252, %s253
      %p267 = scmp.eq.s32.totalorder %s26, 1
      %p268 = por %p266, %p267
      %p270 = scmp.ne.s32.totalorder %s253, %s269
      %p271 = scmp.eq.s32.totalorder %s26, 0
      %p272 = por %p270, %p271
      %s274 = sadd.s32 %s273, 1
      %p277 = scmp.eq.s32.totalorder %s20, 1
      %p278 = scmp.ne.s32.totalorder %s273, %s275
      %p279 = scmp.eq.s32.totalorder %s20, 0
      %p280 = por %p278, %p279
      %p281 = scmp.ne.s32.totalorder %s273, %s275
      %p282 = scmp.eq.s32.totalorder %s25, 1
      %p283 = por %p281, %p282
      %p284 = scmp.ne.s32.totalorder %s275, %s276
      %p285 = scmp.eq.s32.totalorder %s25, 0
      %p286 = por %p284, %p285
      %p287 = scmp.ne.s32.totalorder %s275, %s276
      %p288 = scmp.eq.s32.totalorder %s26, 1
      %p289 = por %p287, %p288
      %p291 = scmp.ne.s32.totalorder %s276, %s290
      %p292 = scmp.eq.s32.totalorder %s26, 0
      %p293 = por %p291, %p292
      %p294 = scmp.le.s32.totalorder 1, %s20
      %p295 = scmp.lt.s32.totalorder %s20, 3
      %p296 = pnand %p294, %p295
      %p297 = pneg %p296
      // Predicated region
      $region9: #{star_encoder_forward.1} parent=5 // pred_check
        _
      $region10: #{star_encoder_forward.1} parent=5 // pred_check_branch
        %299 = sbr.rel (%p296) target = $region12
      $region11: #{star_encoder_forward.1} parent=5 // pred_region
        %s300 = ssub.s32 %s20, 1
        // Predicated region
        $region13: #{star_encoder_forward.1} parent=11 // pred_check
          %p301 = pneg %p41
        $region14: #{star_encoder_forward.1} parent=11 // pred_check_branch
          %303 = sbr.rel (%p301) target = $region16
        $region15: #{star_encoder_forward.1} parent=11 // pred_region
          _
        $region16: #{star_encoder_forward.1} parent=11 // pred_fallthru
          _
        // Predicated region
        $region17: #{star_encoder_forward.1} parent=11 // pred_check
          %p304 = pneg %p62
        $region18: #{star_encoder_forward.1} parent=11 // pred_check_branch
          %306 = sbr.rel (%p304) target = $region20
        $region19: #{star_encoder_forward.1} parent=11 // pred_region
          _
        $region20: #{star_encoder_forward.1} parent=11 // pred_fallthru
          _
        // Predicated region
        $region21: #{star_encoder_forward.1} parent=11 // pred_check
          %p307 = pneg %p83
        $region22: #{star_encoder_forward.1} parent=11 // pred_check_branch
          %309 = sbr.rel (%p307) target = $region24
        $region23: #{star_encoder_forward.1} parent=11 // pred_region
          _
        $region24: #{star_encoder_forward.1} parent=11 // pred_fallthru
          _
      $region12: #{star_encoder_forward.1} parent=5 // pred_fallthru
        _
      %p310 = scmp.lt.s32.totalorder %s20, 2
      // Predicated region
      $region25: #{star_encoder_forward.1} parent=5 // pred_check
        %p311 = pneg %p310
      $region26: #{star_encoder_forward.1} parent=5 // pred_check_branch
        %313 = sbr.rel (%p311) target = $region28
      $region27: #{star_encoder_forward.1} parent=5 // pred_region
        // Predicated region
        $region29: #{star_encoder_forward.1} parent=27 // pred_check
          %p314 = pneg %p103
        $region30: #{star_encoder_forward.1} parent=27 // pred_check_branch
          %316 = sbr.rel (%p314) target = $region32
        $region31: #{star_encoder_forward.1} parent=27 // pred_region
          %s317 = sand.u32 %s93, 1
          %s318 = scalar_lea.sflag [#allocation5], %s317
          %s319 = sand.u32 %s93, 1
          %s320 = smul.addr %s319, 32
          %s321 = scalar_lea.vmem [#allocation4], %s320
          %323 = vsyncadd %s318, 0
          %s324 = smul.addr %s20, 4
          %s325 = smul.addr %s324, 8
          %s326 = scalar_lea.hbm %s3, %s325
          %s327 = sshll.u32 %s326, 4
          %s328 = int_to_ptr.hbm [resolvable:$true] %s327
          %s329 = sshll.u32 %s321, 4
          %s330 = int_to_ptr.vmem [resolvable:$true] %s329
          %335 = dma.hbm_to_vmem [thread:$0]  %s328, 512, %s330, %s318, 128, 128, 8
        $region32: #{star_encoder_forward.1} parent=27 // pred_fallthru
          _
        // Predicated region
        $region33: #{star_encoder_forward.1} parent=27 // pred_check
          %p336 = pneg %p129
        $region34: #{star_encoder_forward.1} parent=27 // pred_check_branch
          %338 = sbr.rel (%p336) target = $region36
        $region35: #{star_encoder_forward.1} parent=27 // pred_region
          %p339 = scmp.lt.s32.totalorder %s20, 1
          %s340 = scalar_select %p339, %s20, 1
          %s341 = smul.addr %s340, 4
          %s342 = smul.addr %s341, 8
          %s343 = scalar_lea.vmem %s4, %s342
        $region36: #{star_encoder_forward.1} parent=27 // pred_fallthru
          _
        // Predicated region
        $region37: #{star_encoder_forward.1} parent=27 // pred_check
          %p344 = pneg %p155
        $region38: #{star_encoder_forward.1} parent=27 // pred_check_branch
          %346 = sbr.rel (%p344) target = $region40
        $region39: #{star_encoder_forward.1} parent=27 // pred_region
          %p347 = scmp.lt.s32.totalorder %s20, 1
          %s348 = scalar_select %p347, %s20, 1
          %s349 = smul.addr %s348, 4
          %s350 = smul.addr %s349, 8
          %s351 = scalar_lea.vmem %s5, %s350
        $region40: #{star_encoder_forward.1} parent=27 // pred_fallthru
          _
        // Predicated region
        $region41: #{star_encoder_forward.1} parent=27 // pred_check
          %p352 = pneg %p181
        $region42: #{star_encoder_forward.1} parent=27 // pred_check_branch
          %354 = sbr.rel (%p352) target = $region44
        $region43: #{star_encoder_forward.1} parent=27 // pred_region
          %p355 = scmp.lt.s32.totalorder %s20, 1
          %s356 = scalar_select %p355, %s20, 1
          %s357 = smul.addr %s356, 8
          %s358 = smul.addr %s357, 8
          %s359 = scalar_lea.vmem %s6, %s358
        $region44: #{star_encoder_forward.1} parent=27 // pred_fallthru
          _
        // Predicated region
        $region45: #{star_encoder_forward.1} parent=27 // pred_check
          %p360 = pneg %p207
        $region46: #{star_encoder_forward.1} parent=27 // pred_check_branch
          %362 = sbr.rel (%p360) target = $region48
        $region47: #{star_encoder_forward.1} parent=27 // pred_region
          %p363 = scmp.lt.s32.totalorder %s20, 1
          %s364 = scalar_select %p363, %s20, 1
          %s365 = scalar_lea.vmem %s7, %s364
        $region48: #{star_encoder_forward.1} parent=27 // pred_fallthru
          _
        // Predicated region
        $region49: #{star_encoder_forward.1} parent=27 // pred_check
          %p366 = pneg %p233
        $region50: #{star_encoder_forward.1} parent=27 // pred_check_branch
          %368 = sbr.rel (%p366) target = $region52
        $region51: #{star_encoder_forward.1} parent=27 // pred_region
          %p369 = scmp.lt.s32.totalorder %s20, 1
          %s370 = scalar_select %p369, %s20, 1
          %s371 = scalar_lea.vmem %s8, %s370
        $region52: #{star_encoder_forward.1} parent=27 // pred_fallthru
          _
        // Predicated region
        $region53: #{star_encoder_forward.1} parent=27 // pred_check
          %p372 = pneg %p259
        $region54: #{star_encoder_forward.1} parent=27 // pred_check_branch
          %374 = sbr.rel (%p372) target = $region56
        $region55: #{star_encoder_forward.1} parent=27 // pred_region
          %p375 = scmp.lt.s32.totalorder %s20, 1
          %s376 = scalar_select %p375, %s20, 1
          %s377 = smul.addr %s376, 8
          %s378 = scalar_lea.vmem %s9, %s377
        $region56: #{star_encoder_forward.1} parent=27 // pred_fallthru
          _
      $region28: #{star_encoder_forward.1} parent=5 // pred_fallthru
        _
      %p379 = scmp.le.s32.totalorder 1, %s20
      %p380 = scmp.lt.s32.totalorder %s20, 3
      %p381 = pnand %p379, %p380
      %p382 = pneg %p381
      // Predicated region
      $region57: #{star_encoder_forward.1} parent=5 // pred_check
        _
      $region58: #{star_encoder_forward.1} parent=5 // pred_check_branch
        %384 = sbr.rel (%p381) target = $region60
      $region59: #{star_encoder_forward.1} parent=5 // pred_region
        %s385 = ssub.s32 %s20, 1
        %s386 = sand.u32 %s96, 1
        %s387 = scalar_lea.sflag [#allocation5], %s386
        %s388 = sand.u32 %s96, 1
        %s389 = smul.addr %s388, 32
        %s390 = scalar_lea.vmem [#allocation4], %s389
        // Predicated region
        $region61: #{star_encoder_forward.1} parent=59 // pred_check
          %p391 = pneg %p109
        $region62: #{star_encoder_forward.1} parent=59 // pred_check_branch
          %393 = sbr.rel (%p391) target = $region64
        $region63: #{star_encoder_forward.1} parent=59 // pred_region
          %395 = dma.done %s387, 512
        $region64: #{star_encoder_forward.1} parent=59 // pred_fallthru
          _
        %p396 = pneg %p41
        %p397 = pneg %p38
        %p398 = pneg %p62
        %p399 = pneg %p59
        %p400 = pneg %p83
        %p401 = pneg %p80
        %s402 = sand.u32 %s96, 1
        %s403 = scalar_lea.sflag [#allocation5], %s402
        %s404 = sand.u32 %s96, 1
        %s405 = smul.addr %s404, 32
        %s406 = scalar_lea.vmem [#allocation4], %s405
        %p407 = pneg %p109
        %p408 = pneg %p106
        %p409 = scmp.lt.s32.totalorder %s25, 1
        %s410 = scalar_select %p409, %s25, 1
        %s411 = smul.addr %s410, 4
        %s412 = smul.addr %s411, 8
        %s413 = scalar_lea.vmem %s4, %s412
        %p414 = pneg %p135
        %p415 = pneg %p132
        %p416 = scmp.lt.s32.totalorder %s25, 1
        %s417 = scalar_select %p416, %s25, 1
        %s418 = smul.addr %s417, 4
        %s419 = smul.addr %s418, 8
        %s420 = scalar_lea.vmem %s5, %s419
        %p421 = pneg %p161
        %p422 = pneg %p158
        %p423 = scmp.lt.s32.totalorder %s25, 1
        %s424 = scalar_select %p423, %s25, 1
        %s425 = smul.addr %s424, 8
        %s426 = smul.addr %s425, 8
        %s427 = scalar_lea.vmem %s6, %s426
        %p428 = pneg %p187
        %p429 = pneg %p184
        %p430 = scmp.lt.s32.totalorder %s25, 1
        %s431 = scalar_select %p430, %s25, 1
        %s432 = scalar_lea.vmem %s7, %s431
        %p433 = pneg %p213
        %p434 = pneg %p210
        %p435 = scmp.lt.s32.totalorder %s25, 1
        %s436 = scalar_select %p435, %s25, 1
        %s437 = scalar_lea.vmem %s8, %s436
        %p438 = pneg %p239
        %p439 = pneg %p236
        %p440 = scmp.lt.s32.totalorder %s25, 1
        %s441 = scalar_select %p440, %s25, 1
        %s442 = smul.addr %s441, 8
        %s443 = scalar_lea.vmem %s9, %s442
        %p444 = pneg %p265
        %p445 = pneg %p262
        %p446 = pneg %p286
        %p447 = pneg %p283
        %p448 = scmp.lt.s32.totalorder %s25, 1
        %s449 = scalar_select %p448, %s25, 1
        %s450 = smul.addr %s449, 4
        %s451 = smul.addr %s450, 8
        %s452 = scalar_lea.vmem %s4, %s451
        %p453 = scmp.lt.s32.totalorder %s25, 1
        %s454 = scalar_select %p453, %s25, 1
        %s455 = smul.addr %s454, 4
        %s456 = smul.addr %s455, 8
        %s457 = scalar_lea.vmem %s5, %s456
        %p458 = scmp.lt.s32.totalorder %s25, 1
        %s459 = scalar_select %p458, %s25, 1
        %s460 = smul.addr %s459, 8
        %s461 = smul.addr %s460, 8
        %s462 = scalar_lea.vmem %s6, %s461
        %p463 = scmp.lt.s32.totalorder %s25, 1
        %s464 = scalar_select %p463, %s25, 1
        %s465 = scalar_lea.vmem %s7, %s464
        %p466 = scmp.lt.s32.totalorder %s25, 1
        %s467 = scalar_select %p466, %s25, 1
        %s468 = scalar_lea.vmem %s8, %s467
        %p469 = scmp.lt.s32.totalorder %s25, 1
        %s470 = scalar_select %p469, %s25, 1
        %s471 = smul.addr %s470, 8
        %s472 = scalar_lea.vmem %s9, %s471
        %p473 = scmp.eq.s32.totalorder %s25, 0
        // Predicated region
        $region65: #{star_encoder_forward.1} parent=59 // pred_check
          %p474 = pneg %p473
        $region66: #{star_encoder_forward.1} parent=59 // pred_check_branch
          %476 = sbr.rel (%p474) target = $region68
        $region67: #{star_encoder_forward.1} parent=59 // pred_region
          %v477 = vld [vmem:[%s0] sm:$0xff]
          %v478 = vld [vmem:[%s0 + $0x8] sm:$0xff]
          %vm479 = vcmask 261120
          %480 = vst.msk [vmem:[#allocation2] sm:$0xff] %vm479, %v477
          %481 = vst.msk [vmem:[#allocation2 + $0x8] sm:$0xff] %vm479, %v478
        $region68: #{star_encoder_forward.1} parent=59 // pred_fallthru
          _
        %v482 = vld [vmem:[#allocation2] sm:$0xff]
        %v483 = vld [vmem:[#allocation2 + $0x8] sm:$0xff]
        %v484 = vld [vmem:[%s472] sm:$0x3f]
        %v485 = vld [vmem:[%s390] sm:$0xff]
        %v486 = vld [vmem:[%s390 + $0x8] sm:$0xff]
        %v487 = vld [vmem:[%s390 + $0x10] sm:$0xff]
        %v488 = vld [vmem:[%s390 + $0x18] sm:$0xff]
        %v489 = vld [vmem:[%s465] sm:$0x1]
        %v491 = vperm.slane %v489, 0
        %vm493 = vcmask 261120
        %v495 = vsel %vm493, %v482, 0
        %v498 = vsel %vm493, %v483, 0
        %500 = vmatpush.msra.mxu0 0.0
        %501 = vmatpush.msra.mxu0 0.0
        %502 = vmatpush.msra.mxu0 0.0
        %503 = vmatpush.msra.mxu0 0.0
        %504 = vmatpush.msra.mxu0 0.0
        %505 = vmatpush.msra.mxu0 0.0
        %506 = vmatpush.msra.mxu0 0.0
        %507 = vmatpush.msra.mxu0 0.0
        %508 = vmatpush.msra.mxu0 0.0
        %509 = vmatpush.msra.mxu0 0.0
        %510 = vmatpush.msra.mxu0 0.0
        %511 = vmatpush.msra.mxu0 0.0
        %512 = vmatpush.msra.mxu0 %v488
        %513 = vmatpush.msra.mxu0 %v487
        %514 = vmatpush.msra.mxu0 %v486
        %515 = vmatpush.msra.mxu0 %v485
        %516 = vmatmul.f32.gmra.mxu0 %v495
        %v517 = vpop.f32.mrf.mxu0
        %v518 = vadd.f32 %v491, %v517
        %519 = vmatmul.f32.gmra.mxu0 %v498
        %v520 = vpop.f32.mrf.mxu0
        %v521 = vadd.f32 %v491, %v520
        %522 = vdwg.mxu0
        %v523 = vld [vmem:[%s1] sm:$0x1]
        %525 = vrot.lane.b32.xlu0 %v518, 96
        %v526 = vpop.permute.xlu0 %525
        %vm527 = vcmask 130048
        %v528 = vsel %vm527, %v518, 0
        %v530 = vsel %vm527, %v526, 0
        %532 = vmatpush.xpose.msra.mxu0 0.0
        %533 = vmatpush.xpose.msra.mxu0 0.0
        %534 = vmatpush.xpose.msra.mxu0 0.0
        %535 = vmatpush.xpose.msra.mxu0 0.0
        %536 = vmatpush.xpose.msra.mxu0 0.0
        %537 = vmatpush.xpose.msra.mxu0 0.0
        %538 = vmatpush.xpose.msra.mxu0 0.0
        %539 = vmatpush.xpose.msra.mxu0 0.0
        %540 = vmatpush.xpose.msra.mxu0 0.0
        %541 = vmatpush.xpose.msra.mxu0 0.0
        %542 = vmatpush.xpose.msra.mxu0 0.0
        %543 = vmatpush.xpose.msra.mxu0 0.0
        %544 = vmatpush.xpose.msra.mxu0 0.0
        %545 = vmatpush.xpose.msra.mxu0 0.0
        %546 = vmatpush.xpose.msra.mxu0 0.0
        %547 = vmatpush.xpose.msra.mxu0 %v530
        %548 = vmatmul.f32.gmra.mxu0 %v528
        %v549 = vpop.f32.mrf.mxu0
        %v550 = vadd.f32 0.0, %v549
        %551 = vdwg.mxu0
        %v552 = vmul.f32 %v550, 0.25
        %v553 = vperm.slane %v523, 0
        %v554 = vadd.f32 %v552, %v553
        %vm555 = vcmask 64512
        %v556 = vsel %vm555, %v554, -inf
        %557 = vmax.xlane.f32.xlu0 %v556
        %v558 = vpop.xlane.xlu0 %557
        %v559 = vsub.f32 %v554, %v558
        %v560 = vmul.f32 %v559, 1.442695
        %v561 = vpow.pop %v560
        %v562 = vsel %vm555, %v561, 0.0
        %563 = vadd.xlane.f32.xlu0 %v562
        %v564 = vpop.xlane.xlu0 %563
        %v565 = vrcp.pop %v564
        %v566 = vmul.f32 %v561, %v565
        %567 = vrot.lane.b32.xlu0 %v518, 64
        %v568 = vpop.permute.xlu0 %567
        %v571 = vsel %vm555, %v566, 0
        %573 = vmatpush.msra.mxu0 0.0
        %574 = vmatpush.msra.mxu0 0.0
        %575 = vmatpush.msra.mxu0 0.0
        %576 = vmatpush.msra.mxu0 0.0
        %577 = vmatpush.msra.mxu0 0.0
        %578 = vmatpush.msra.mxu0 0.0
        %579 = vmatpush.msra.mxu0 0.0
        %580 = vmatpush.msra.mxu0 0.0
        %581 = vmatpush.msra.mxu0 0.0
        %582 = vmatpush.msra.mxu0 0.0
        %583 = vmatpush.msra.mxu0 0.0
        %584 = vmatpush.msra.mxu0 0.0
        %585 = vmatpush.msra.mxu0 0.0
        %586 = vmatpush.msra.mxu0 0.0
        %587 = vmatpush.msra.mxu0 0.0
        %588 = vmatpush.msra.mxu0 %v568
        %589 = vmatmul.f32.gmra.mxu0 %v571
        %v590 = vpop.f32.mrf.mxu0
        %v591 = vadd.f32 0.0, %v590
        %592 = vdwg.mxu0
        %593 = vst.msk [vmem:[#allocation3] sm:$0xff] %vm527, %v591
        %594 = vrot.lane.b32.xlu0 %v518, 112
        %v595 = vpop.permute.xlu0 %594
        %596 = vrot.lane.b32.xlu0 %v518, 80
        %v597 = vpop.permute.xlu0 %596
        %v598 = vsel %vm527, %v595, 0
        %v600 = vsel %vm527, %v597, 0
        %602 = vmatpush.xpose.msra.mxu0 0.0
        %603 = vmatpush.xpose.msra.mxu0 0.0
        %604 = vmatpush.xpose.msra.mxu0 0.0
        %605 = vmatpush.xpose.msra.mxu0 0.0
        %606 = vmatpush.xpose.msra.mxu0 0.0
        %607 = vmatpush.xpose.msra.mxu0 0.0
        %608 = vmatpush.xpose.msra.mxu0 0.0
        %609 = vmatpush.xpose.msra.mxu0 0.0
        %610 = vmatpush.xpose.msra.mxu0 0.0
        %611 = vmatpush.xpose.msra.mxu0 0.0
        %612 = vmatpush.xpose.msra.mxu0 0.0
        %613 = vmatpush.xpose.msra.mxu0 0.0
        %614 = vmatpush.xpose.msra.mxu0 0.0
        %615 = vmatpush.xpose.msra.mxu0 0.0
        %616 = vmatpush.xpose.msra.mxu0 0.0
        %617 = vmatpush.xpose.msra.mxu0 %v600
        %618 = vmatmul.f32.gmra.mxu0 %v598
        %v619 = vpop.f32.mrf.mxu0
        %v620 = vadd.f32 0.0, %v619
        %621 = vdwg.mxu0
        %v622 = vmul.f32 %v620, 0.25
        %v623 = vadd.f32 %v622, %v553
        %v624 = vsel %vm555, %v623, -inf
        %625 = vmax.xlane.f32.xlu0 %v624
        %v626 = vpop.xlane.xlu0 %625
        %v627 = vsub.f32 %v623, %v626
        %v628 = vmul.f32 %v627, 1.442695
        %v629 = vpow.pop %v628
        %v630 = vsel %vm555, %v629, 0.0
        %631 = vadd.xlane.f32.xlu0 %v630
        %v632 = vpop.xlane.xlu0 %631
        %v633 = vrcp.pop %v632
        %v634 = vmul.f32 %v629, %v633
        %635 = vrot.lane.b32.xlu0 %v518, 48
        %v636 = vpop.permute.xlu0 %635
        %v639 = vsel %vm555, %v634, 0
        %641 = vmatpush.msra.mxu0 0.0
        %642 = vmatpush.msra.mxu0 0.0
        %643 = vmatpush.msra.mxu0 0.0
        %644 = vmatpush.msra.mxu0 0.0
        %645 = vmatpush.msra.mxu0 0.0
        %646 = vmatpush.msra.mxu0 0.0
        %647 = vmatpush.msra.mxu0 0.0
        %648 = vmatpush.msra.mxu0 0.0
        %649 = vmatpush.msra.mxu0 0.0
        %650 = vmatpush.msra.mxu0 0.0
        %651 = vmatpush.msra.mxu0 0.0
        %652 = vmatpush.msra.mxu0 0.0
        %653 = vmatpush.msra.mxu0 0.0
        %654 = vmatpush.msra.mxu0 0.0
        %655 = vmatpush.msra.mxu0 0.0
        %656 = vmatpush.msra.mxu0 %v636
        %657 = vmatmul.f32.gmra.mxu0 %v639
        %v658 = vpop.f32.mrf.mxu0
        %v659 = vadd.f32 0.0, %v658
        %660 = vdwg.mxu0
        %662 = vrot.lane.b32.xlu0 %v659, 16
        %v663 = vpop.permute.xlu0 %662
        %vm665 = vcmask 261248
        %666 = vst.msk [vmem:[#allocation3] sm:$0xff] %vm665, %v663
        %v667 = vld [vmem:[%s1 + $0x1] sm:$0x1]
        %669 = vrot.lane.b32.xlu0 %v521, 96
        %v670 = vpop.permute.xlu0 %669
        %v671 = vsel %vm527, %v521, 0
        %v673 = vsel %vm527, %v670, 0
        %675 = vmatpush.xpose.msra.mxu0 0.0
        %676 = vmatpush.xpose.msra.mxu0 0.0
        %677 = vmatpush.xpose.msra.mxu0 0.0
        %678 = vmatpush.xpose.msra.mxu0 0.0
        %679 = vmatpush.xpose.msra.mxu0 0.0
        %680 = vmatpush.xpose.msra.mxu0 0.0
        %681 = vmatpush.xpose.msra.mxu0 0.0
        %682 = vmatpush.xpose.msra.mxu0 0.0
        %683 = vmatpush.xpose.msra.mxu0 0.0
        %684 = vmatpush.xpose.msra.mxu0 0.0
        %685 = vmatpush.xpose.msra.mxu0 0.0
        %686 = vmatpush.xpose.msra.mxu0 0.0
        %687 = vmatpush.xpose.msra.mxu0 0.0
        %688 = vmatpush.xpose.msra.mxu0 0.0
        %689 = vmatpush.xpose.msra.mxu0 0.0
        %690 = vmatpush.xpose.msra.mxu0 %v673
        %691 = vmatmul.f32.gmra.mxu0 %v671
        %v692 = vpop.f32.mrf.mxu0
        %v693 = vadd.f32 0.0, %v692
        %694 = vdwg.mxu0
        %v695 = vmul.f32 %v693, 0.25
        %v696 = vperm.slane %v667, 0
        %v697 = vadd.f32 %v695, %v696
        %v698 = vsel %vm555, %v697, -inf
        %699 = vmax.xlane.f32.xlu0 %v698
        %v700 = vpop.xlane.xlu0 %699
        %v701 = vsub.f32 %v697, %v700
        %v702 = vmul.f32 %v701, 1.442695
        %v703 = vpow.pop %v702
        %v704 = vsel %vm555, %v703, 0.0
        %705 = vadd.xlane.f32.xlu0 %v704
        %v706 = vpop.xlane.xlu0 %705
        %v707 = vrcp.pop %v706
        %v708 = vmul.f32 %v703, %v707
        %709 = vrot.lane.b32.xlu0 %v521, 64
        %v710 = vpop.permute.xlu0 %709
        %v713 = vsel %vm555, %v708, 0
        %715 = vmatpush.msra.mxu0 0.0
        %716 = vmatpush.msra.mxu0 0.0
        %717 = vmatpush.msra.mxu0 0.0
        %718 = vmatpush.msra.mxu0 0.0
        %719 = vmatpush.msra.mxu0 0.0
        %720 = vmatpush.msra.mxu0 0.0
        %721 = vmatpush.msra.mxu0 0.0
        %722 = vmatpush.msra.mxu0 0.0
        %723 = vmatpush.msra.mxu0 0.0
        %724 = vmatpush.msra.mxu0 0.0
        %725 = vmatpush.msra.mxu0 0.0
        %726 = vmatpush.msra.mxu0 0.0
        %727 = vmatpush.msra.mxu0 0.0
        %728 = vmatpush.msra.mxu0 0.0
        %729 = vmatpush.msra.mxu0 0.0
        %730 = vmatpush.msra.mxu0 %v710
        %731 = vmatmul.f32.gmra.mxu0 %v713
        %v732 = vpop.f32.mrf.mxu0
        %v733 = vadd.f32 0.0, %v732
        %734 = vdwg.mxu0
        %735 = vst.msk [vmem:[#allocation3 + $0x8] sm:$0xff] %vm527, %v733
        %736 = vrot.lane.b32.xlu0 %v521, 112
        %v737 = vpop.permute.xlu0 %736
        %738 = vrot.lane.b32.xlu0 %v521, 80
        %v739 = vpop.permute.xlu0 %738
        %v740 = vsel %vm527, %v737, 0
        %v742 = vsel %vm527, %v739, 0
        %744 = vmatpush.xpose.msra.mxu0 0.0
        %745 = vmatpush.xpose.msra.mxu0 0.0
        %746 = vmatpush.xpose.msra.mxu0 0.0
        %747 = vmatpush.xpose.msra.mxu0 0.0
        %748 = vmatpush.xpose.msra.mxu0 0.0
        %749 = vmatpush.xpose.msra.mxu0 0.0
        %750 = vmatpush.xpose.msra.mxu0 0.0
        %751 = vmatpush.xpose.msra.mxu0 0.0
        %752 = vmatpush.xpose.msra.mxu0 0.0
        %753 = vmatpush.xpose.msra.mxu0 0.0
        %754 = vmatpush.xpose.msra.mxu0 0.0
        %755 = vmatpush.xpose.msra.mxu0 0.0
        %756 = vmatpush.xpose.msra.mxu0 0.0
        %757 = vmatpush.xpose.msra.mxu0 0.0
        %758 = vmatpush.xpose.msra.mxu0 0.0
        %759 = vmatpush.xpose.msra.mxu0 %v742
        %760 = vmatmul.f32.gmra.mxu0 %v740
        %v761 = vpop.f32.mrf.mxu0
        %v762 = vadd.f32 0.0, %v761
        %763 = vdwg.mxu0
        %v764 = vmul.f32 %v762, 0.25
        %v765 = vadd.f32 %v764, %v696
        %v766 = vsel %vm555, %v765, -inf
        %767 = vmax.xlane.f32.xlu0 %v766
        %v768 = vpop.xlane.xlu0 %767
        %v769 = vsub.f32 %v765, %v768
        %v770 = vmul.f32 %v769, 1.442695
        %v771 = vpow.pop %v770
        %v772 = vsel %vm555, %v771, 0.0
        %773 = vadd.xlane.f32.xlu0 %v772
        %v774 = vpop.xlane.xlu0 %773
        %v775 = vrcp.pop %v774
        %v776 = vmul.f32 %v771, %v775
        %777 = vrot.lane.b32.xlu0 %v521, 48
        %v778 = vpop.permute.xlu0 %777
        %v781 = vsel %vm555, %v776, 0
        %783 = vmatpush.msra.mxu0 0.0
        %784 = vmatpush.msra.mxu0 0.0
        %785 = vmatpush.msra.mxu0 0.0
        %786 = vmatpush.msra.mxu0 0.0
        %787 = vmatpush.msra.mxu0 0.0
        %788 = vmatpush.msra.mxu0 0.0
        %789 = vmatpush.msra.mxu0 0.0
        %790 = vmatpush.msra.mxu0 0.0
        %791 = vmatpush.msra.mxu0 0.0
        %792 = vmatpush.msra.mxu0 0.0
        %793 = vmatpush.msra.mxu0 0.0
        %794 = vmatpush.msra.mxu0 0.0
        %795 = vmatpush.msra.mxu0 0.0
        %796 = vmatpush.msra.mxu0 0.0
        %797 = vmatpush.msra.mxu0 0.0
        %798 = vmatpush.msra.mxu0 %v778
        %799 = vmatmul.f32.gmra.mxu0 %v781
        %v800 = vpop.f32.mrf.mxu0
        %v801 = vadd.f32 0.0, %v800
        %802 = vdwg.mxu0
        %804 = vrot.lane.b32.xlu0 %v801, 16
        %v805 = vpop.permute.xlu0 %804
        %807 = vst.msk [vmem:[#allocation3 + $0x8] sm:$0xff] %vm665, %v805
        %v808 = vld [vmem:[#allocation3] sm:$0xff]
        %v809 = vld [vmem:[#allocation3 + $0x8] sm:$0xff]
        %v810 = vld [vmem:[%s452] sm:$0xff]
        %v811 = vld [vmem:[%s452 + $0x8] sm:$0xff]
        %v812 = vld [vmem:[%s452 + $0x10] sm:$0xff]
        %v813 = vld [vmem:[%s452 + $0x18] sm:$0xff]
        %v814 = vperm.slane %v484, 0
        %v816 = vsel %vm493, %v808, 0
        %v819 = vsel %vm493, %v809, 0
        %821 = vmatpush.msra.mxu0 0.0
        %822 = vmatpush.msra.mxu0 0.0
        %823 = vmatpush.msra.mxu0 0.0
        %824 = vmatpush.msra.mxu0 0.0
        %825 = vmatpush.msra.mxu0 0.0
        %826 = vmatpush.msra.mxu0 0.0
        %827 = vmatpush.msra.mxu0 0.0
        %828 = vmatpush.msra.mxu0 0.0
        %829 = vmatpush.msra.mxu0 0.0
        %830 = vmatpush.msra.mxu0 0.0
        %831 = vmatpush.msra.mxu0 0.0
        %832 = vmatpush.msra.mxu0 0.0
        %833 = vmatpush.msra.mxu0 %v813
        %834 = vmatpush.msra.mxu0 %v812
        %835 = vmatpush.msra.mxu0 %v811
        %836 = vmatpush.msra.mxu0 %v810
        %837 = vmatmul.f32.gmra.mxu0 %v816
        %v838 = vpop.f32.mrf.mxu0
        %v839 = vadd.f32 %v814, %v838
        %840 = vmatmul.f32.gmra.mxu0 %v819
        %v841 = vpop.f32.mrf.mxu0
        %v842 = vadd.f32 %v814, %v841
        %843 = vdwg.mxu0
        %v844 = vadd.f32 %v482, %v839
        %v845 = vadd.f32 %v483, %v842
        %v846 = vsel %vm493, %v844, 0.0
        %847 = vadd.xlane.f32.xlu0 %v846
        %v848 = vpop.xlane.xlu0 %847
        %v849 = vsel %vm493, %v845, 0.0
        %850 = vadd.xlane.f32.xlu0 %v849
        %v851 = vpop.xlane.xlu0 %850
        %v852 = vrcp.pop 32.0
        %v853 = vmul.f32 32.0, %v852
        %v854 = vsub.f32 1.0, %v853
        %v855 = vmul.f32 %v852, %v854
        %v856 = vadd.f32 %v852, %v855
        %vm857 = vweird.f32 %v852
        %v858 = vsel %vm857, %v852, %v856
        %v859 = vmul.f32 %v848, %v858
        %v860 = vmul.f32 %v851, %v858
        %v861 = vsub.f32 %v844, %v859
        %v862 = vsub.f32 %v845, %v860
        %v863 = vmul.f32 %v861, %v861
        %v864 = vmul.f32 %v862, %v862
        %v865 = vsel %vm493, %v863, 0.0
        %866 = vadd.xlane.f32.xlu0 %v865
        %v867 = vpop.xlane.xlu0 %866
        %v868 = vsel %vm493, %v864, 0.0
        %869 = vadd.xlane.f32.xlu0 %v868
        %v870 = vpop.xlane.xlu0 %869
        %v871 = vmul.f32 %v867, %v858
        %v872 = vmul.f32 %v870, %v858
        %v873 = vadd.f32 %v871, 1e-12
        %v874 = vadd.f32 %v872, 1e-12
        %v875 = vrsqrt.pop %v873
        %v876 = vmul.f32 %v875, %v873
        %v877 = vmul.f32 %v876, %v875
        %v878 = vmul.f32 0.5, %v877
        %v879 = vsub.f32 1.5, %v878
        %v880 = vmul.f32 %v875, %v879
        %vm881 = vweird.f32 %v873
        %vm882 = vweird.f32 %v875
        %vm883 = vmor %vm881, %vm882
        %v884 = vsel %vm883, %v875, %v880
        %v885 = vrsqrt.pop %v874
        %v886 = vmul.f32 %v885, %v874
        %v887 = vmul.f32 %v886, %v885
        %v888 = vmul.f32 0.5, %v887
        %v889 = vsub.f32 1.5, %v888
        %v890 = vmul.f32 %v885, %v889
        %vm891 = vweird.f32 %v874
        %vm892 = vweird.f32 %v885
        %vm893 = vmor %vm891, %vm892
        %v894 = vsel %vm893, %v885, %v890
        %v895 = vmul.f32 %v861, %v884
        %v896 = vmul.f32 %v862, %v894
        %v897 = vperm.slane %v484, 1
        %v898 = vmul.f32 %v895, %v897
        %v899 = vmul.f32 %v896, %v897
        %v900 = vperm.slane %v484, 2
        %v901 = vadd.f32 %v898, %v900
        %v902 = vadd.f32 %v899, %v900
        %v903 = vld [vmem:[%s457] sm:$0xff]
        %v904 = vld [vmem:[%s457 + $0x8] sm:$0xff]
        %v905 = vld [vmem:[%s457 + $0x10] sm:$0xff]
        %v906 = vld [vmem:[%s457 + $0x18] sm:$0xff]
        %v907 = vld [vmem:[%s468] sm:$0x1]
        %v909 = vperm.slane %v907, 0
        %v912 = vsel %vm493, %v901, 0
        %v915 = vsel %vm493, %v902, 0
        %917 = vmatpush.msra.mxu0 0.0
        %918 = vmatpush.msra.mxu0 0.0
        %919 = vmatpush.msra.mxu0 0.0
        %920 = vmatpush.msra.mxu0 0.0
        %921 = vmatpush.msra.mxu0 0.0
        %922 = vmatpush.msra.mxu0 0.0
        %923 = vmatpush.msra.mxu0 0.0
        %924 = vmatpush.msra.mxu0 0.0
        %925 = vmatpush.msra.mxu0 0.0
        %926 = vmatpush.msra.mxu0 0.0
        %927 = vmatpush.msra.mxu0 0.0
        %928 = vmatpush.msra.mxu0 0.0
        %929 = vmatpush.msra.mxu0 %v906
        %930 = vmatpush.msra.mxu0 %v905
        %931 = vmatpush.msra.mxu0 %v904
        %932 = vmatpush.msra.mxu0 %v903
        %933 = vmatmul.f32.gmra.mxu0 %v912
        %v934 = vpop.f32.mrf.mxu0
        %v935 = vadd.f32 %v909, %v934
        %936 = vmatmul.f32.gmra.mxu0 %v915
        %v937 = vpop.f32.mrf.mxu0
        %v938 = vadd.f32 %v909, %v937
        %939 = vdwg.mxu0
        %v940 = vmul.f32 %v935, %v935
        %v941 = vmul.f32 %v938, %v938
        %v942 = vmul.f32 %v935, %v940
        %v943 = vmul.f32 %v938, %v941
        %v944 = vmul.f32 %v942, 0.044715
        %v945 = vmul.f32 %v943, 0.044715
        %v946 = vadd.f32 %v935, %v944
        %v947 = vadd.f32 %v938, %v945
        %v948 = vmul.f32 %v946, 0.7978846
        %v949 = vmul.f32 %v947, 0.7978846
        %v950 = vtanh.pop %v948
        %v951 = vtanh.pop %v949
        %v952 = vadd.f32 %v950, 1.0
        %v953 = vadd.f32 %v951, 1.0
        %v954 = vmul.f32 %v952, 0.5
        %v955 = vmul.f32 %v953, 0.5
        %v956 = vmul.f32 %v935, %v954
        %v957 = vmul.f32 %v938, %v955
        %v958 = vld [vmem:[%s462] sm:$0xff]
        %v959 = vld [vmem:[%s462 + $0x8] sm:$0xff]
        %v960 = vld [vmem:[%s462 + $0x10] sm:$0xff]
        %v961 = vld [vmem:[%s462 + $0x18] sm:$0xff]
        %v962 = vld [vmem:[%s462 + $0x20] sm:$0xff]
        %v963 = vld [vmem:[%s462 + $0x28] sm:$0xff]
        %v964 = vld [vmem:[%s462 + $0x30] sm:$0xff]
        %v965 = vld [vmem:[%s462 + $0x38] sm:$0xff]
        %v966 = vperm.slane %v484, 3
        %vm967 = vcmask 523264
        %v969 = vsel %vm967, %v956, 0
        %v972 = vsel %vm967, %v957, 0
        %974 = vmatpush.msra.mxu0 0.0
        %975 = vmatpush.msra.mxu0 0.0
        %976 = vmatpush.msra.mxu0 0.0
        %977 = vmatpush.msra.mxu0 0.0
        %978 = vmatpush.msra.mxu0 0.0
        %979 = vmatpush.msra.mxu0 0.0
        %980 = vmatpush.msra.mxu0 0.0
        %981 = vmatpush.msra.mxu0 0.0
        %982 = vmatpush.msra.mxu0 %v965
        %983 = vmatpush.msra.mxu0 %v964
        %984 = vmatpush.msra.mxu0 %v963
        %985 = vmatpush.msra.mxu0 %v962
        %986 = vmatpush.msra.mxu0 %v961
        %987 = vmatpush.msra.mxu0 %v960
        %988 = vmatpush.msra.mxu0 %v959
        %989 = vmatpush.msra.mxu0 %v958
        %990 = vmatmul.f32.gmra.mxu0 %v969
        %v991 = vpop.f32.mrf.mxu0
        %v992 = vadd.f32 %v966, %v991
        %993 = vmatmul.f32.gmra.mxu0 %v972
        %v994 = vpop.f32.mrf.mxu0
        %v995 = vadd.f32 %v966, %v994
        %996 = vdwg.mxu0
        %v997 = vadd.f32 %v901, %v992
        %v998 = vadd.f32 %v902, %v995
        %v999 = vsel %vm493, %v997, 0.0
        %1000 = vadd.xlane.f32.xlu0 %v999
        %v1001 = vpop.xlane.xlu0 %1000
        %v1002 = vsel %vm493, %v998, 0.0
        %1003 = vadd.xlane.f32.xlu0 %v1002
        %v1004 = vpop.xlane.xlu0 %1003
        %v1005 = vmul.f32 %v1001, %v858
        %v1006 = vmul.f32 %v1004, %v858
        %v1007 = vsub.f32 %v997, %v1005
        %v1008 = vsub.f32 %v998, %v1006
        %v1009 = vmul.f32 %v1007, %v1007
        %v1010 = vmul.f32 %v1008, %v1008
        %v1011 = vsel %vm493, %v1009, 0.0
        %1012 = vadd.xlane.f32.xlu0 %v1011
        %v1013 = vpop.xlane.xlu0 %1012
        %v1014 = vsel %vm493, %v1010, 0.0
        %1015 = vadd.xlane.f32.xlu0 %v1014
        %v1016 = vpop.xlane.xlu0 %1015
        %v1017 = vmul.f32 %v1013, %v858
        %v1018 = vmul.f32 %v1016, %v858
        %v1019 = vadd.f32 %v1017, 1e-12
        %v1020 = vadd.f32 %v1018, 1e-12
        %v1021 = vrsqrt.pop %v1019
        %v1022 = vmul.f32 %v1021, %v1019
        %v1023 = vmul.f32 %v1022, %v1021
        %v1024 = vmul.f32 0.5, %v1023
        %v1025 = vsub.f32 1.5, %v1024
        %v1026 = vmul.f32 %v1021, %v1025
        %vm1027 = vweird.f32 %v1019
        %vm1028 = vweird.f32 %v1021
        %vm1029 = vmor %vm1027, %vm1028
        %v1030 = vsel %vm1029, %v1021, %v1026
        %v1031 = vrsqrt.pop %v1020
        %v1032 = vmul.f32 %v1031, %v1020
        %v1033 = vmul.f32 %v1032, %v1031
        %v1034 = vmul.f32 0.5, %v1033
        %v1035 = vsub.f32 1.5, %v1034
        %v1036 = vmul.f32 %v1031, %v1035
        %vm1037 = vweird.f32 %v1020
        %vm1038 = vweird.f32 %v1031
        %vm1039 = vmor %vm1037, %vm1038
        %v1040 = vsel %vm1039, %v1031, %v1036
        %v1041 = vmul.f32 %v1007, %v1030
        %v1042 = vmul.f32 %v1008, %v1040
        %v1043 = vperm.slane %v484, 4
        %v1044 = vmul.f32 %v1041, %v1043
        %v1045 = vmul.f32 %v1042, %v1043
        %v1046 = vperm.slane %v484, 5
        %v1047 = vadd.f32 %v1044, %v1046
        %v1048 = vadd.f32 %v1045, %v1046
        %1049 = vst.msk [vmem:[#allocation2] sm:$0xff] %vm493, %v1047
        %1050 = vst.msk [vmem:[#allocation2 + $0x8] sm:$0xff] %vm493, %v1048
        %p1051 = scmp.eq.s32.totalorder %s25, 1
        // Predicated region
        $region69: #{star_encoder_forward.1} parent=59 // pred_check
          %p1052 = pneg %p1051
        $region70: #{star_encoder_forward.1} parent=59 // pred_check_branch
          %1054 = sbr.rel (%p1052) target = $region72
        $region71: #{star_encoder_forward.1} parent=59 // pred_region
          %v1055 = vld [vmem:[%s2] sm:$0x3]
          %v1057 = vsel %vm527, %v1055, 0
          %1059 = vmatpush.msra.mxu0 0.0
          %1060 = vmatpush.msra.mxu0 0.0
          %1061 = vmatpush.msra.mxu0 0.0
          %1062 = vmatpush.msra.mxu0 0.0
          %1063 = vmatpush.msra.mxu0 0.0
          %1064 = vmatpush.msra.mxu0 0.0
          %1065 = vmatpush.msra.mxu0 0.0
          %1066 = vmatpush.msra.mxu0 0.0
          %1067 = vmatpush.msra.mxu0 0.0
          %1068 = vmatpush.msra.mxu0 0.0
          %1069 = vmatpush.msra.mxu0 0.0
          %1070 = vmatpush.msra.mxu0 0.0
          %1071 = vmatpush.msra.mxu0 0.0
          %1072 = vmatpush.msra.mxu0 0.0
          %1073 = vmatpush.msra.mxu0 %v1048
          %1074 = vmatpush.msra.mxu0 %v1047
          %1075 = vmatmul.f32.gmra.mxu0 %v1057
          %v1076 = vpop.f32.mrf.mxu0
          %v1077 = vadd.f32 0.0, %v1076
          %1078 = vdwg.mxu0
          %v1079 = vmul.f32 %v1077, %v1077
          %vm1080 = vcmask 254976
          %v1081 = vsel %vm1080, %v1079, 0.0
          %1082 = vadd.xlane.f32.xlu0 %v1081
          %v1083 = vpop.xlane.xlu0 %1082
          %v1084 = vmax.f32 %v1083, 1e-18
          %v1085 = vrsqrt.pop %v1084
          %v1086 = vmul.f32 %v1085, %v1084
          %v1087 = vmul.f32 %v1086, %v1085
          %v1088 = vmul.f32 0.5, %v1087
          %v1089 = vsub.f32 1.5, %v1088
          %v1090 = vmul.f32 %v1085, %v1089
          %vm1091 = vweird.f32 %v1084
          %vm1092 = vweird.f32 %v1085
          %vm1093 = vmor %vm1091, %vm1092
          %v1094 = vsel %vm1093, %v1085, %v1090
          %v1095 = vmul.f32 %v1077, %v1094
          %1096 = vst.msk [vmem:[#allocation7] sm:$0x3] %vm1080, %v1095
        $region72: #{star_encoder_forward.1} parent=59 // pred_fallthru
          _
        // Predicated region
        $region73: #{star_encoder_forward.1} parent=59 // pred_check
          %p1097 = pneg %p283
        $region74: #{star_encoder_forward.1} parent=59 // pred_check_branch
          %1099 = sbr.rel (%p1097) target = $region76
        $region75: #{star_encoder_forward.1} parent=59 // pred_region
          %1101 = vsyncadd [#allocation6], 0
          %s1103 = sshll.u32 [#allocation7], 4
          %s1104 = int_to_ptr.vmem [resolvable:$true] %s1103
          %s1105 = sshll.u32 %s10, 4
          %s1106 = int_to_ptr.hbm [resolvable:$true] %s1105
          %1108 = dma.vmem_to_hbm [thread:$0]  %s1104, 32, %s1106, [#allocation6]
        $region76: #{star_encoder_forward.1} parent=59 // pred_fallthru
          _
        // Predicated region
        $region77: #{star_encoder_forward.1} parent=59 // pred_check
          %p1109 = pneg %p283
        $region78: #{star_encoder_forward.1} parent=59 // pred_check_branch
          %1111 = sbr.rel (%p1109) target = $region80
        $region79: #{star_encoder_forward.1} parent=59 // pred_region
          %1113 = dma.done [#allocation6], 32
        $region80: #{star_encoder_forward.1} parent=59 // pred_fallthru
          _
      $region60: #{star_encoder_forward.1} parent=5 // pred_fallthru
        _
      %p1114 = scmp.le.s32.totalorder 2, %s20
      // Predicated region
      $region81: #{star_encoder_forward.1} parent=5 // pred_check
        %p1115 = pneg %p1114
      $region82: #{star_encoder_forward.1} parent=5 // pred_check_branch
        %1117 = sbr.rel (%p1115) target = $region84
      $region83: #{star_encoder_forward.1} parent=5 // pred_region
        %s1118 = ssub.s32 %s20, 2
      $region84: #{star_encoder_forward.1} parent=5 // pred_fallthru
        _
    $region6: #{star_encoder_forward.1} parent=1 // loop_footer
      %s24 = sadd.s32 1, %s20
    $region7: #{star_encoder_forward.1} parent=1 // loop_footer_branch
      %19 = sbr.rel target = $region3
    $region8: #{star_encoder_forward.1} parent=1 // loop_exit
      _
    %1119 = vsyncpa [#allocation5], 1
    %s1120 = scalar_lea.sflag [#allocation5], 1
    %1121 = vsyncpa %s1120, 1
    %1122 = vsyncpa [#allocation6], 1
    %s1123 = scalar_lea.sflag [#allocation6], 1
    %1124 = vsyncpa %s1123, 1

</llo_original>
